<compile_context>
chip_gen: v6e
topology: v6e:2x2x1
jax: 0.10.0
libtpu: 0.0.40
codegen_flags: <defaults>
</compile_context>

<pallas_src>
import functools
import math

import jax
import jax.numpy as jnp
from jax.experimental import pallas as pl
from jax.experimental.pallas import tpu as pltpu  # noqa: F401  (TPU backend assumed)

D_MODEL = 32
NHEAD = 4
DIM_FF = 64
HEAD_DIM = D_MODEL // NHEAD
SEQ = 8
BATCH = 2
LN_EPS = 1e-5


# ---------------------------- in-kernel helpers ----------------------------

def _erf_approx(x):
    # Abramowitz & Stegun 7.1.26, |err| < 1.5e-7 ; VPU/EUP ops only.
    a1, a2, a3, a4, a5 = 0.254829592, -0.284496736, 1.421413741, -1.453152027, 1.061405429
    p = 0.3275911
    sgn = jnp.where(x >= 0.0, 1.0, -1.0)
    ax = jnp.abs(x)
    t = 1.0 / (1.0 + p * ax)
    poly = ((((a5 * t + a4) * t + a3) * t + a2) * t + a1) * t
    return sgn * (1.0 - poly * jnp.exp(-ax * ax))


def _gelu_exact(x):
    # matches nn.GELU() (erf-based) to f32 precision
    return 0.5 * x * (1.0 + _erf_approx(x * (1.0 / math.sqrt(2.0))))


def _layer_norm(z, gamma, beta):
    mean = jnp.mean(z, axis=-1, keepdims=True)
    c = z - mean
    var = jnp.mean(c * c, axis=-1, keepdims=True)
    return c * jax.lax.rsqrt(var + LN_EPS) * gamma + beta


def _is_pow2(n):
    return n > 0 and (n & (n - 1)) == 0


# ---------------------------- fused encoder-layer kernel ----------------------------

def _encoder_layer_kernel(x_ref, w_ref, vec_ref, o_ref, *, nbatch, nhead, dim_ff):
    x = x_ref[...]                                   # (SB, D) f32, batch minor in rows
    SB, D = x.shape
    H, F = nhead, dim_ff
    HD = D // H
    HS = H * SB

    # ---- packed weight slab (one DMA), rows: [0:D) W_vo | [D:2D) W_qk | [2D:3D) W1 | [3D:3D+F) W2 ----
    w_vo = w_ref[0:D, :]                             # (D, H*D)  V proj with W_o folded in, lane-dense
    w_qk = w_ref[D:2 * D, 0:2 * D]                   # (D, 2D)   q columns already pre-scaled
    w_1 = w_ref[2 * D:3 * D, 0:F]                    # (D, F)
    w_2 = w_ref[3 * D:3 * D + F, 0:D]                # (F, D)

    # ---- packed bias / LN slab (one DMA) ----
    b_qk = vec_ref[0:1, 0:2 * D]
    b_1 = vec_ref[1:2, 0:F]
    b_o = vec_ref[2:3, 0:D]                          # o_net bias with b_v @ W_o folded in
    b_2 = vec_ref[3:4, 0:D]
    ln1_g, ln1_b = vec_ref[4:5, 0:D], vec_ref[5:6, 0:D]
    ln2_g, ln2_b = vec_ref[6:7, 0:D], vec_ref[7:8, 0:D]

    # ---- fused projections ----
    qk = jnp.dot(x, w_qk, preferred_element_type=jnp.float32) + b_qk     # (SB, 2D)
    vo = jnp.dot(x, w_vo, preferred_element_type=jnp.float32)            # (SB, H*D)
    q = qk[:, 0:D]                                   # scaling folded offline
    k = qk[:, D:2 * D]

    # ---- all-head scores with ONE matmul: block-diagonal Q stack (HS, D) . k^T -> (HS, SB) ----
    di = jax.lax.broadcasted_iota(jnp.int32, (SB, D), 1)
    q_stack = jnp.concatenate(
        [jnp.where((di >= h * HD) & (di < (h + 1) * HD), q, 0.0) for h in range(H)],
        axis=0)                                      # (HS, D); row block h keeps only head-h dims
    s = jax.lax.dot_general(q_stack, k, (((1,), (1,)), ((), ())),
                            preferred_element_type=jnp.float32)          # (HS, SB)

    # ---- cross-batch mask + softmax, batched over all heads at once ----
    rows = jax.lax.broadcasted_iota(jnp.int32, (HS, SB), 0)
    cols = jax.lax.broadcasted_iota(jnp.int32, (HS, SB), 1)
    if _is_pow2(nbatch):                             # row batch = (i % SB) % B = i % B  (SB % B == 0)
        same_batch = (rows & (nbatch - 1)) == (cols & (nbatch - 1))
    else:
        same_batch = (rows % nbatch) == (cols % nbatch)
    s = jnp.where(same_batch, s, jnp.float32(-1e30))
    s = s - jnp.max(s, axis=-1, keepdims=True)       # stable softmax
    p = jnp.exp(s)
    p = p / jnp.sum(p, axis=-1, keepdims=True)       # exact divide (PyTorch parity)

    # ---- attention output: W_o already folded ->  acc += p_h @ vo[:, h*D:(h+1)*D] ----
    acc = jnp.zeros((SB, D), jnp.float32)
    for h in range(H):
        p_h = p[h * SB:(h + 1) * SB, :]
        acc = acc + jnp.dot(p_h, vo[:, h * D:(h + 1) * D],
                            preferred_element_type=jnp.float32)
    attn_out = acc + b_o

    # ---- residual + LayerNorm1 ----
    z = _layer_norm(x + attn_out, ln1_g, ln1_b)

    # ---- FFN: linear1 -> GELU(erf) -> linear2 ----
    hdn = _gelu_exact(jnp.dot(z, w_1, preferred_element_type=jnp.float32) + b_1)
    ff = jnp.dot(hdn, w_2, preferred_element_type=jnp.float32) + b_2

    # ---- residual + LayerNorm2 -> single store ----
    o_ref[...] = _layer_norm(z + ff, ln2_g, ln2_b).astype(o_ref.dtype)


# ---------------------------- offline parameter folding / packing ----------------------------

def fold_params(params, nhead=NHEAD):
    """One-time offline algebra: fold q-scaling into W_q/b_q, fold W_o into the V projection,
    and pack all parameters into a single weight slab + a single bias/LN slab (3 kernel inputs)."""
    w_qkv, b_qkv = params["w_qkv"], params["b_qkv"]
    w_o, b_o = params["w_o"], params["b_o"]
    D = w_o.shape[0]
    F = params["w1"].shape[1]
    HD = D // nhead
    scaling = float(HD) ** (-0.5)

    w_q = w_qkv[:, 0:D] * scaling
    b_q = b_qkv[0:D] * scaling
    w_k = w_qkv[:, D:2 * D]
    b_k = b_qkv[D:2 * D]
    w_v = w_qkv[:, 2 * D:3 * D]
    b_v = b_qkv[2 * D:3 * D]

    # per-head fold: (softmax(q_h k_h^T) v_h) @ W_o_h == softmax(.) @ (x @ (W_v_h @ W_o_h))
    w_vo = jnp.concatenate(
        [w_v[:, h * HD:(h + 1) * HD] @ w_o[h * HD:(h + 1) * HD, :] for h in range(nhead)],
        axis=1)                                      # (D, nhead*D)
    b_o_folded = b_o + b_v @ w_o                     # softmax rows sum to 1 -> exact fold of b_v

    wide = max(nhead * D, 2 * D, F, D)

    def padw(a):
        return jnp.pad(a, ((0, 0), (0, wide - a.shape[1])))

    w_all = jnp.concatenate([
        padw(w_vo),
        padw(jnp.concatenate([w_q, w_k], axis=1)),
        padw(params["w1"]),
        padw(params["w2"]),
    ], axis=0).astype(jnp.float32)                   # (3D + F, wide) = (160, 128)

    vwide = max(2 * D, F, D)

    def padv(a):
        return jnp.pad(a, (0, vwide - a.shape[0]))

    vecs = jnp.stack([
        padv(jnp.concatenate([b_q, b_k])),
        padv(params["b1"]),
        padv(b_o_folded),
        padv(params["b2"]),
        padv(params["ln1_g"]),
        padv(params["ln1_b"]),
        padv(params["ln2_g"]),
        padv(params["ln2_b"]),
    ], axis=0).astype(jnp.float32)                   # (8, vwide) = (8, 64)

    return {"w_all": w_all, "vecs": vecs}


# ---------------------------- forward wrapper ----------------------------

def transformer_encoder_layer(src, w_all, vecs, *, nhead=NHEAD):
    """src: (S, B, D) f32, folded/packed params -> (S, B, D). Whole layer = one pallas_call, 3 DMAs in."""
    S, B, D = src.shape
    F = w_all.shape[0] - 3 * D
    x2d = src.reshape(S * B, D)                      # contiguous, free reshape

    def full(shape):
        return pl.BlockSpec(shape, lambda: tuple(0 for _ in shape))

    kern = functools.partial(_encoder_layer_kernel, nbatch=B, nhead=nhead, dim_ff=F)
    out = pl.pallas_call(
        kern,
        out_shape=jax.ShapeDtypeStruct((S * B, D), src.dtype),
        in_specs=[full((S * B, D)), full(w_all.shape), full(vecs.shape)],
        out_specs=full((S * B, D)),
    )(x2d, w_all, vecs)
    return out.reshape(S, B, D)


# ---------------------------- parameter init (matches PyTorch module init) ----------------------------

def init_params(key):
    D, F = D_MODEL, DIM_FF
    ks = jax.random.split(key, 6)
    # qkv_net: xavier_uniform weight (3D, D), zero bias (per _reset_parameters); stored transposed (D, 3D)
    xav = math.sqrt(6.0 / (D + 3 * D))
    w_qkv = jax.random.uniform(ks[0], (D, 3 * D), jnp.float32, -xav, xav)
    b_qkv = jnp.zeros((3 * D,), jnp.float32)
    # o_net: default Linear weight init, zero bias (per _reset_parameters); stored transposed (D, D)
    bo_bound = 1.0 / math.sqrt(D)
    w_o = jax.random.uniform(ks[1], (D, D), jnp.float32, -bo_bound, bo_bound)
    b_o = jnp.zeros((D,), jnp.float32)
    # linear1 / linear2: default PyTorch Linear init; stored transposed
    b1_bound = 1.0 / math.sqrt(D)
    w1 = jax.random.uniform(ks[2], (D, F), jnp.float32, -b1_bound, b1_bound)
    b1 = jax.random.uniform(ks[3], (F,), jnp.float32, -b1_bound, b1_bound)
    b2_bound = 1.0 / math.sqrt(F)
    w2 = jax.random.uniform(ks[4], (F, D), jnp.float32, -b2_bound, b2_bound)
    b2 = jax.random.uniform(ks[5], (D,), jnp.float32, -b2_bound, b2_bound)
    return dict(
        w_qkv=w_qkv, b_qkv=b_qkv, w_o=w_o, b_o=b_o,
        w1=w1, b1=b1, w2=w2, b2=b2,
        ln1_g=jnp.ones((D,), jnp.float32), ln1_b=jnp.zeros((D,), jnp.float32),
        ln2_g=jnp.ones((D,), jnp.float32), ln2_b=jnp.zeros((D,), jnp.float32),
    )


# ---------------------------- pure-JAX reference (PyTorch semantics, unfolded params) ----------------------------

def reference_forward(src, params, nhead=NHEAD, eps=LN_EPS):
    S, B, D = src.shape
    HD = D // nhead
    scaling = float(HD) ** (-0.5)
    qkv = src @ params["w_qkv"] + params["b_qkv"]
    q, k, v = jnp.split(qkv, 3, axis=-1)
    q = q * scaling

    def heads(t):
        return t.reshape(S, B * nhead, HD).transpose(1, 0, 2)

    qh, kh, vh = heads(q), heads(k), heads(v)
    w = jax.nn.softmax(jnp.einsum("bqd,bkd->bqk", qh, kh), axis=-1)
    a = jnp.einsum("bqk,bkd->bqd", w, vh).transpose(1, 0, 2).reshape(S, B, D)
    attn = a @ params["w_o"] + params["b_o"]

    def ln(t, g, b):
        m = t.mean(-1, keepdims=True)
        var = ((t - m) ** 2).mean(-1, keepdims=True)
        return (t - m) * jax.lax.rsqrt(var + eps) * g + b

    z = ln(src + attn, params["ln1_g"], params["ln1_b"])
    h = jax.nn.gelu(z @ params["w1"] + params["b1"], approximate=False)
    return ln(z + (h @ params["w2"] + params["b2"]), params["ln2_g"], params["ln2_b"])


if __name__ == "__main__":
    key = jax.random.PRNGKey(0)
    k_p, k_x = jax.random.split(key)
    params = init_params(k_p)
    src = jax.random.normal(k_x, (SEQ, BATCH, D_MODEL), jnp.float32)

    folded = fold_params(params)                     # one-time offline weight folding / packing
    fwd = jax.jit(transformer_encoder_layer)
    out = jax.block_until_ready(fwd(src, folded["w_all"], folded["vecs"]))

    assert out.shape == (SEQ, BATCH, D_MODEL)
    assert bool(jnp.all(jnp.isfinite(out)))

    ref = reference_forward(src, params)
    err = float(jnp.max(jnp.abs(out - ref)))
    assert err < 1e-3, f"mismatch vs reference: {err}"
    print("KERNEL_OK")
</pallas_src>

<mosaic_0001>
module attributes {stable_mosaic.version = 11 : i64} {
  func.func @_encoder_layer_kernel(%arg0: memref<16x32xf32, #tpu.memory_space<vmem>>, %arg1: memref<160x128xf32, #tpu.memory_space<vmem>>, %arg2: memref<8x64xf32, #tpu.memory_space<vmem>>, %arg3: memref<16x32xf32, #tpu.memory_space<vmem>>) attributes {dimension_semantics = [], scalar_prefetch = 0 : i64, scratch_operands = 0 : i64, tpu.core_type = #tpu.core_type<tc>} {
    %c0 = arith.constant 0 : index
    %c0_0 = arith.constant 0 : index
    %0 = vector.load %arg0[%c0, %c0_0] : memref<16x32xf32, #tpu.memory_space<vmem>>, vector<16x32xf32>
    %c0_1 = arith.constant 0 : index
    %c0_2 = arith.constant 0 : index
    %1 = vector.load %arg1[%c0_1, %c0_2] : memref<160x128xf32, #tpu.memory_space<vmem>>, vector<32x128xf32>
    %c32 = arith.constant 32 : index
    %c0_3 = arith.constant 0 : index
    %2 = vector.load %arg1[%c32, %c0_3] : memref<160x128xf32, #tpu.memory_space<vmem>>, vector<32x64xf32>
    %c64 = arith.constant 64 : index
    %c0_4 = arith.constant 0 : index
    %3 = vector.load %arg1[%c64, %c0_4] : memref<160x128xf32, #tpu.memory_space<vmem>>, vector<32x64xf32>
    %c96 = arith.constant 96 : index
    %c0_5 = arith.constant 0 : index
    %4 = vector.load %arg1[%c96, %c0_5] : memref<160x128xf32, #tpu.memory_space<vmem>>, vector<64x32xf32>
    %c0_6 = arith.constant 0 : index
    %c0_7 = arith.constant 0 : index
    %5 = vector.load %arg2[%c0_6, %c0_7] : memref<8x64xf32, #tpu.memory_space<vmem>>, vector<1x64xf32>
    %c1 = arith.constant 1 : index
    %c0_8 = arith.constant 0 : index
    %6 = vector.load %arg2[%c1, %c0_8] : memref<8x64xf32, #tpu.memory_space<vmem>>, vector<1x64xf32>
    %c2 = arith.constant 2 : index
    %c0_9 = arith.constant 0 : index
    %7 = vector.load %arg2[%c2, %c0_9] : memref<8x64xf32, #tpu.memory_space<vmem>>, vector<1x32xf32>
    %c3 = arith.constant 3 : index
    %c0_10 = arith.constant 0 : index
    %8 = vector.load %arg2[%c3, %c0_10] : memref<8x64xf32, #tpu.memory_space<vmem>>, vector<1x32xf32>
    %c4 = arith.constant 4 : index
    %c0_11 = arith.constant 0 : index
    %9 = vector.load %arg2[%c4, %c0_11] : memref<8x64xf32, #tpu.memory_space<vmem>>, vector<1x32xf32>
    %c5 = arith.constant 5 : index
    %c0_12 = arith.constant 0 : index
    %10 = vector.load %arg2[%c5, %c0_12] : memref<8x64xf32, #tpu.memory_space<vmem>>, vector<1x32xf32>
    %c6 = arith.constant 6 : index
    %c0_13 = arith.constant 0 : index
    %11 = vector.load %arg2[%c6, %c0_13] : memref<8x64xf32, #tpu.memory_space<vmem>>, vector<1x32xf32>
    %c7 = arith.constant 7 : index
    %c0_14 = arith.constant 0 : index
    %12 = vector.load %arg2[%c7, %c0_14] : memref<8x64xf32, #tpu.memory_space<vmem>>, vector<1x32xf32>
    %cst = arith.constant dense<0.000000e+00> : vector<16x64xf32>
    %13 = tpu.matmul %0, %2, %cst {dimension_numbers = #tpu.dot_dimension_numbers<[1], [0], [0], [1], [0, 0, 1, 1], [], []>} : vector<16x32xf32>, vector<32x64xf32>, vector<16x64xf32> -> vector<16x64xf32>
    %14 = vector.broadcast %5 : vector<1x64xf32> to vector<16x64xf32>
    %15 = arith.addf %13, %14 : vector<16x64xf32>
    %cst_15 = arith.constant dense<0.000000e+00> : vector<16x128xf32>
    %16 = tpu.matmul %0, %1, %cst_15 {dimension_numbers = #tpu.dot_dimension_numbers<[1], [0], [0], [1], [0, 0, 1, 1], [], []>} : vector<16x32xf32>, vector<32x128xf32>, vector<16x128xf32> -> vector<16x128xf32>
    %17 = vector.extract_strided_slice %15 {offsets = [0, 0], sizes = [16, 32], strides = [1, 1]} : vector<16x64xf32> to vector<16x32xf32>
    %18 = vector.extract_strided_slice %15 {offsets = [0, 32], sizes = [16, 32], strides = [1, 1]} : vector<16x64xf32> to vector<16x32xf32>
    %19 = tpu.iota {dimensions = array<i32: 1>} : vector<16x32xi32>
    %c0_i32 = arith.constant 0 : i32
    %20 = vector.broadcast %c0_i32 : i32 to vector<16x32xi32>
    %21 = arith.cmpi sge, %19, %20 : vector<16x32xi32>
    %c8_i32 = arith.constant 8 : i32
    %22 = vector.broadcast %c8_i32 : i32 to vector<16x32xi32>
    %23 = arith.cmpi slt, %19, %22 : vector<16x32xi32>
    %24 = arith.andi %21, %23 : vector<16x32xi1>
    %cst_16 = arith.constant 0.000000e+00 : f32
    %25 = vector.broadcast %cst_16 : f32 to vector<16x32xf32>
    %26 = arith.select %24, %17, %25 : vector<16x32xi1>, vector<16x32xf32>
    %c8_i32_17 = arith.constant 8 : i32
    %27 = vector.broadcast %c8_i32_17 : i32 to vector<16x32xi32>
    %28 = arith.cmpi sge, %19, %27 : vector<16x32xi32>
    %c16_i32 = arith.constant 16 : i32
    %29 = vector.broadcast %c16_i32 : i32 to vector<16x32xi32>
    %30 = arith.cmpi slt, %19, %29 : vector<16x32xi32>
    %31 = arith.andi %28, %30 : vector<16x32xi1>
    %cst_18 = arith.constant 0.000000e+00 : f32
    %32 = vector.broadcast %cst_18 : f32 to vector<16x32xf32>
    %33 = arith.select %31, %17, %32 : vector<16x32xi1>, vector<16x32xf32>
    %c16_i32_19 = arith.constant 16 : i32
    %34 = vector.broadcast %c16_i32_19 : i32 to vector<16x32xi32>
    %35 = arith.cmpi sge, %19, %34 : vector<16x32xi32>
    %c24_i32 = arith.constant 24 : i32
    %36 = vector.broadcast %c24_i32 : i32 to vector<16x32xi32>
    %37 = arith.cmpi slt, %19, %36 : vector<16x32xi32>
    %38 = arith.andi %35, %37 : vector<16x32xi1>
    %cst_20 = arith.constant 0.000000e+00 : f32
    %39 = vector.broadcast %cst_20 : f32 to vector<16x32xf32>
    %40 = arith.select %38, %17, %39 : vector<16x32xi1>, vector<16x32xf32>
    %c24_i32_21 = arith.constant 24 : i32
    %41 = vector.broadcast %c24_i32_21 : i32 to vector<16x32xi32>
    %42 = arith.cmpi sge, %19, %41 : vector<16x32xi32>
    %c32_i32 = arith.constant 32 : i32
    %43 = vector.broadcast %c32_i32 : i32 to vector<16x32xi32>
    %44 = arith.cmpi slt, %19, %43 : vector<16x32xi32>
    %45 = arith.andi %42, %44 : vector<16x32xi1>
    %cst_22 = arith.constant 0.000000e+00 : f32
    %46 = vector.broadcast %cst_22 : f32 to vector<16x32xf32>
    %47 = arith.select %45, %17, %46 : vector<16x32xi1>, vector<16x32xf32>
    %48 = tpu.concatenate %26, %33, %40, %47 in 0 : vector<16x32xf32>, vector<16x32xf32>, vector<16x32xf32>, vector<16x32xf32> -> vector<64x32xf32>
    %cst_23 = arith.constant dense<0.000000e+00> : vector<64x16xf32>
    %49 = tpu.matmul %48, %18, %cst_23 {dimension_numbers = #tpu.dot_dimension_numbers<[1], [1], [0], [0], [0, 0, 1, 0], [], []>} : vector<64x32xf32>, vector<16x32xf32>, vector<64x16xf32> -> vector<64x16xf32>
    %50 = tpu.iota {dimensions = array<i32: 0>} : vector<64x16xi32>
    %51 = tpu.iota {dimensions = array<i32: 1>} : vector<64x16xi32>
    %c1_i32 = arith.constant 1 : i32
    %52 = vector.broadcast %c1_i32 : i32 to vector<64x16xi32>
    %53 = arith.andi %50, %52 : vector<64x16xi32>
    %c1_i32_24 = arith.constant 1 : i32
    %54 = vector.broadcast %c1_i32_24 : i32 to vector<64x16xi32>
    %55 = arith.andi %51, %54 : vector<64x16xi32>
    %56 = arith.cmpi eq, %53, %55 : vector<64x16xi32>
    %cst_25 = arith.constant -1.000000e+30 : f32
    %57 = vector.broadcast %cst_25 : f32 to vector<64x16xf32>
    %58 = arith.select %56, %49, %57 : vector<64x16xi1>, vector<64x16xf32>
    %cst_26 = arith.constant dense<0xFF800000> : vector<64xf32>
    %59 = vector.multi_reduction <maximumf>, %58, %cst_26 [1] : vector<64x16xf32> to vector<64xf32>
    %60 = vector.shape_cast %59 : vector<64xf32> to vector<64x1xf32>
    %61 = vector.broadcast %60 : vector<64x1xf32> to vector<64x16xf32>
    %62 = arith.subf %58, %61 : vector<64x16xf32>
    %63 = math.exp %62 : vector<64x16xf32>
    %cst_27 = arith.constant dense<0.000000e+00> : vector<64xf32>
    %64 = vector.multi_reduction <add>, %63, %cst_27 [1] : vector<64x16xf32> to vector<64xf32>
    %65 = vector.shape_cast %64 : vector<64xf32> to vector<64x1xf32>
    %66 = vector.broadcast %65 : vector<64x1xf32> to vector<64x16xf32>
    %67 = arith.divf %63, %66 : vector<64x16xf32>
    %cst_28 = arith.constant 0.000000e+00 : f32
    %68 = vector.broadcast %cst_28 : f32 to vector<16x32xf32>
    %69 = vector.extract_strided_slice %67 {offsets = [0, 0], sizes = [16, 16], strides = [1, 1]} : vector<64x16xf32> to vector<16x16xf32>
    %70 = vector.extract_strided_slice %16 {offsets = [0, 0], sizes = [16, 32], strides = [1, 1]} : vector<16x128xf32> to vector<16x32xf32>
    %cst_29 = arith.constant dense<0.000000e+00> : vector<16x32xf32>
    %71 = tpu.matmul %69, %70, %cst_29 {dimension_numbers = #tpu.dot_dimension_numbers<[1], [0], [0], [1], [0, 0, 1, 1], [], []>} : vector<16x16xf32>, vector<16x32xf32>, vector<16x32xf32> -> vector<16x32xf32>
    %72 = arith.addf %68, %71 : vector<16x32xf32>
    %73 = vector.extract_strided_slice %67 {offsets = [16, 0], sizes = [16, 16], strides = [1, 1]} : vector<64x16xf32> to vector<16x16xf32>
    %74 = vector.extract_strided_slice %16 {offsets = [0, 32], sizes = [16, 32], strides = [1, 1]} : vector<16x128xf32> to vector<16x32xf32>
    %cst_30 = arith.constant dense<0.000000e+00> : vector<16x32xf32>
    %75 = tpu.matmul %73, %74, %cst_30 {dimension_numbers = #tpu.dot_dimension_numbers<[1], [0], [0], [1], [0, 0, 1, 1], [], []>} : vector<16x16xf32>, vector<16x32xf32>, vector<16x32xf32> -> vector<16x32xf32>
    %76 = arith.addf %72, %75 : vector<16x32xf32>
    %77 = vector.extract_strided_slice %67 {offsets = [32, 0], sizes = [16, 16], strides = [1, 1]} : vector<64x16xf32> to vector<16x16xf32>
    %78 = vector.extract_strided_slice %16 {offsets = [0, 64], sizes = [16, 32], strides = [1, 1]} : vector<16x128xf32> to vector<16x32xf32>
    %cst_31 = arith.constant dense<0.000000e+00> : vector<16x32xf32>
    %79 = tpu.matmul %77, %78, %cst_31 {dimension_numbers = #tpu.dot_dimension_numbers<[1], [0], [0], [1], [0, 0, 1, 1], [], []>} : vector<16x16xf32>, vector<16x32xf32>, vector<16x32xf32> -> vector<16x32xf32>
    %80 = arith.addf %76, %79 : vector<16x32xf32>
    %81 = vector.extract_strided_slice %67 {offsets = [48, 0], sizes = [16, 16], strides = [1, 1]} : vector<64x16xf32> to vector<16x16xf32>
    %82 = vector.extract_strided_slice %16 {offsets = [0, 96], sizes = [16, 32], strides = [1, 1]} : vector<16x128xf32> to vector<16x32xf32>
    %cst_32 = arith.constant dense<0.000000e+00> : vector<16x32xf32>
    %83 = tpu.matmul %81, %82, %cst_32 {dimension_numbers = #tpu.dot_dimension_numbers<[1], [0], [0], [1], [0, 0, 1, 1], [], []>} : vector<16x16xf32>, vector<16x32xf32>, vector<16x32xf32> -> vector<16x32xf32>
    %84 = arith.addf %80, %83 : vector<16x32xf32>
    %85 = vector.broadcast %7 : vector<1x32xf32> to vector<16x32xf32>
    %86 = arith.addf %84, %85 : vector<16x32xf32>
    %87 = arith.addf %0, %86 : vector<16x32xf32>
    %cst_33 = arith.constant dense<0.000000e+00> : vector<16xf32>
    %88 = vector.multi_reduction <add>, %87, %cst_33 [1] : vector<16x32xf32> to vector<16xf32>
    %89 = vector.shape_cast %88 : vector<16xf32> to vector<16x1xf32>
    %cst_34 = arith.constant 3.200000e+01 : f32
    %90 = vector.broadcast %cst_34 : f32 to vector<16x1xf32>
    %91 = arith.divf %89, %90 : vector<16x1xf32>
    %92 = vector.broadcast %91 : vector<16x1xf32> to vector<16x32xf32>
    %93 = arith.subf %87, %92 : vector<16x32xf32>
    %94 = arith.mulf %93, %93 : vector<16x32xf32>
    %cst_35 = arith.constant dense<0.000000e+00> : vector<16xf32>
    %95 = vector.multi_reduction <add>, %94, %cst_35 [1] : vector<16x32xf32> to vector<16xf32>
    %96 = vector.shape_cast %95 : vector<16xf32> to vector<16x1xf32>
    %cst_36 = arith.constant 3.200000e+01 : f32
    %97 = vector.broadcast %cst_36 : f32 to vector<16x1xf32>
    %98 = arith.divf %96, %97 : vector<16x1xf32>
    %cst_37 = arith.constant 9.99999974E-6 : f32
    %99 = vector.broadcast %cst_37 : f32 to vector<16x1xf32>
    %100 = arith.addf %98, %99 : vector<16x1xf32>
    %101 = math.rsqrt %100 : vector<16x1xf32>
    %102 = vector.broadcast %101 : vector<16x1xf32> to vector<16x32xf32>
    %103 = arith.mulf %93, %102 : vector<16x32xf32>
    %104 = vector.broadcast %9 : vector<1x32xf32> to vector<16x32xf32>
    %105 = arith.mulf %103, %104 : vector<16x32xf32>
    %106 = vector.broadcast %10 : vector<1x32xf32> to vector<16x32xf32>
    %107 = arith.addf %105, %106 : vector<16x32xf32>
    %cst_38 = arith.constant dense<0.000000e+00> : vector<16x64xf32>
    %108 = tpu.matmul %107, %3, %cst_38 {dimension_numbers = #tpu.dot_dimension_numbers<[1], [0], [0], [1], [0, 0, 1, 1], [], []>} : vector<16x32xf32>, vector<32x64xf32>, vector<16x64xf32> -> vector<16x64xf32>
    %109 = vector.broadcast %6 : vector<1x64xf32> to vector<16x64xf32>
    %110 = arith.addf %108, %109 : vector<16x64xf32>
    %cst_39 = arith.constant 5.000000e-01 : f32
    %111 = vector.broadcast %cst_39 : f32 to vector<16x64xf32>
    %112 = arith.mulf %111, %110 : vector<16x64xf32>
    %cst_40 = arith.constant 0.707106769 : f32
    %113 = vector.broadcast %cst_40 : f32 to vector<16x64xf32>
    %114 = arith.mulf %110, %113 : vector<16x64xf32>
    %cst_41 = arith.constant 0.000000e+00 : f32
    %115 = vector.broadcast %cst_41 : f32 to vector<16x64xf32>
    %116 = arith.cmpf oge, %114, %115 : vector<16x64xf32>
    %cst_42 = arith.constant 1.000000e+00 : f32
    %cst_43 = arith.constant -1.000000e+00 : f32
    %117 = vector.broadcast %cst_42 : f32 to vector<16x64xf32>
    %118 = vector.broadcast %cst_43 : f32 to vector<16x64xf32>
    %119 = arith.select %116, %117, %118 : vector<16x64xi1>, vector<16x64xf32>
    %120 = math.absf %114 : vector<16x64xf32>
    %cst_44 = arith.constant 0.327591091 : f32
    %121 = vector.broadcast %cst_44 : f32 to vector<16x64xf32>
    %122 = arith.mulf %121, %120 : vector<16x64xf32>
    %cst_45 = arith.constant 1.000000e+00 : f32
    %123 = vector.broadcast %cst_45 : f32 to vector<16x64xf32>
    %124 = arith.addf %123, %122 : vector<16x64xf32>
    %cst_46 = arith.constant 1.000000e+00 : f32
    %125 = vector.broadcast %cst_46 : f32 to vector<16x64xf32>
    %126 = arith.divf %125, %124 : vector<16x64xf32>
    %cst_47 = arith.constant 1.06140542 : f32
    %127 = vector.broadcast %cst_47 : f32 to vector<16x64xf32>
    %128 = arith.mulf %127, %126 : vector<16x64xf32>
    %cst_48 = arith.constant -1.45315206 : f32
    %129 = vector.broadcast %cst_48 : f32 to vector<16x64xf32>
    %130 = arith.addf %128, %129 : vector<16x64xf32>
    %131 = arith.mulf %130, %126 : vector<16x64xf32>
    %cst_49 = arith.constant 1.42141378 : f32
    %132 = vector.broadcast %cst_49 : f32 to vector<16x64xf32>
    %133 = arith.addf %131, %132 : vector<16x64xf32>
    %134 = arith.mulf %133, %126 : vector<16x64xf32>
    %cst_50 = arith.constant -0.284496725 : f32
    %135 = vector.broadcast %cst_50 : f32 to vector<16x64xf32>
    %136 = arith.addf %134, %135 : vector<16x64xf32>
    %137 = arith.mulf %136, %126 : vector<16x64xf32>
    %cst_51 = arith.constant 0.254829586 : f32
    %138 = vector.broadcast %cst_51 : f32 to vector<16x64xf32>
    %139 = arith.addf %137, %138 : vector<16x64xf32>
    %140 = arith.mulf %139, %126 : vector<16x64xf32>
    %cst_52 = arith.constant 0.000000e+00 : f32
    %141 = vector.broadcast %cst_52 : f32 to vector<16x64xf32>
    %142 = arith.subf %141, %120 : vector<16x64xf32>
    %143 = arith.mulf %142, %120 : vector<16x64xf32>
    %144 = math.exp %143 : vector<16x64xf32>
    %145 = arith.mulf %140, %144 : vector<16x64xf32>
    %cst_53 = arith.constant 1.000000e+00 : f32
    %146 = vector.broadcast %cst_53 : f32 to vector<16x64xf32>
    %147 = arith.subf %146, %145 : vector<16x64xf32>
    %148 = arith.mulf %119, %147 : vector<16x64xf32>
    %cst_54 = arith.constant 1.000000e+00 : f32
    %149 = vector.broadcast %cst_54 : f32 to vector<16x64xf32>
    %150 = arith.addf %149, %148 : vector<16x64xf32>
    %151 = arith.mulf %112, %150 : vector<16x64xf32>
    %cst_55 = arith.constant dense<0.000000e+00> : vector<16x32xf32>
    %152 = tpu.matmul %151, %4, %cst_55 {dimension_numbers = #tpu.dot_dimension_numbers<[1], [0], [0], [1], [0, 0, 1, 1], [], []>} : vector<16x64xf32>, vector<64x32xf32>, vector<16x32xf32> -> vector<16x32xf32>
    %153 = vector.broadcast %8 : vector<1x32xf32> to vector<16x32xf32>
    %154 = arith.addf %152, %153 : vector<16x32xf32>
    %155 = arith.addf %107, %154 : vector<16x32xf32>
    %cst_56 = arith.constant dense<0.000000e+00> : vector<16xf32>
    %156 = vector.multi_reduction <add>, %155, %cst_56 [1] : vector<16x32xf32> to vector<16xf32>
    %157 = vector.shape_cast %156 : vector<16xf32> to vector<16x1xf32>
    %cst_57 = arith.constant 3.200000e+01 : f32
    %158 = vector.broadcast %cst_57 : f32 to vector<16x1xf32>
    %159 = arith.divf %157, %158 : vector<16x1xf32>
    %160 = vector.broadcast %159 : vector<16x1xf32> to vector<16x32xf32>
    %161 = arith.subf %155, %160 : vector<16x32xf32>
    %162 = arith.mulf %161, %161 : vector<16x32xf32>
    %cst_58 = arith.constant dense<0.000000e+00> : vector<16xf32>
    %163 = vector.multi_reduction <add>, %162, %cst_58 [1] : vector<16x32xf32> to vector<16xf32>
    %164 = vector.shape_cast %163 : vector<16xf32> to vector<16x1xf32>
    %cst_59 = arith.constant 3.200000e+01 : f32
    %165 = vector.broadcast %cst_59 : f32 to vector<16x1xf32>
    %166 = arith.divf %164, %165 : vector<16x1xf32>
    %cst_60 = arith.constant 9.99999974E-6 : f32
    %167 = vector.broadcast %cst_60 : f32 to vector<16x1xf32>
    %168 = arith.addf %166, %167 : vector<16x1xf32>
    %169 = math.rsqrt %168 : vector<16x1xf32>
    %170 = vector.broadcast %169 : vector<16x1xf32> to vector<16x32xf32>
    %171 = arith.mulf %161, %170 : vector<16x32xf32>
    %172 = vector.broadcast %11 : vector<1x32xf32> to vector<16x32xf32>
    %173 = arith.mulf %171, %172 : vector<16x32xf32>
    %174 = vector.broadcast %12 : vector<1x32xf32> to vector<16x32xf32>
    %175 = arith.addf %173, %174 : vector<16x32xf32>
    %c0_61 = arith.constant 0 : index
    %c0_62 = arith.constant 0 : index
    %176 = vector.load %arg3[%c0_61, %c0_62] : memref<16x32xf32, #tpu.memory_space<vmem>>, vector<16x32xf32>
    tpu.vector_store %arg3[%c0_61, %c0_62], %175 {strides = array<i32>} : memref<16x32xf32, #tpu.memory_space<vmem>>, vector<16x32xf32>,
    return
  }
}

</mosaic_0001>

<llo_original>
// kernel: transformer_encoder_layer.1
$region0: #{transformer_encoder_layer.1}
  #allocation0 [shape = 'u32[]', space=smem, size = 0x4, offset = 0x4, fixed_abs, tag = 'smem constant byte address 0x4 - core index']
  #allocation1 [shape = 'u32[144,128]{1,0:T(1,128)}', space=vmem, size = 0x12000, scoped, tag = 'internal scratch']
  %s0 = inlined_call_operand.hbm [shape: f32[16,32], index: 0, kind: input, shape index: {}]
  %s1 = inlined_call_operand.hbm [shape: f32[160,128], index: 1, kind: input, shape index: {}]
  %s2 = inlined_call_operand.hbm [shape: f32[8,64], index: 2, kind: input, shape index: {}]
  %s3 = inlined_call_operand.hbm [shape: f32[16,32], index: 3, kind: output, shape index: {}]
  %s4 = sld [smem:[#allocation0]]
  $region34: #{transformer_encoder_layer.1} parent=0
    _
  %s6 = ssub.s32 1, %s4
  %s7 = scalar_select 0, %s6, %s4
  $region1: #{transformer_encoder_layer.1} parent=0
    #allocation2 [shape = 'u8[8192]{0}', space=vmem, size = 0x2000, scoped, tag = 'input window, operand 0, single buffered']
    #allocation3 [shape = 's32[1]{0}', space=sflag, size = 0x4, scoped, tag = 'scoped memory for transformer_encoder_layer.1']
    #allocation4 [shape = 's32[1]{0}', space=sflag, size = 0x4, scoped, tag = 'scoped memory for transformer_encoder_layer.1']
    #allocation5 [shape = 'u8[81920]{0}', space=vmem, size = 0x14000, scoped, tag = 'input window, operand 1, single buffered']
    #allocation6 [shape = 's32[1]{0}', space=sflag, size = 0x4, scoped, tag = 'scoped memory for transformer_encoder_layer.1']
    #allocation7 [shape = 'u8[4096]{0}', space=vmem, size = 0x1000, scoped, tag = 'input window, operand 2, single buffered']
    #allocation8 [shape = 'u8[8192]{0}', space=vmem, size = 0x2000, scoped, tag = 'output window, operand 0, single buffered']
    %8 = vsyncpa [#allocation3], 0
    %9 = vsyncpa [#allocation6], 0
    %10 = vsyncpa [#allocation4], 0
    // Predicated region
    $region2: #{transformer_encoder_layer.1} parent=1 // pred_check
      _
    $region3: #{transformer_encoder_layer.1} parent=1 // pred_check_branch
      %12 = sbr.rel (0) target = $region5
    $region4: #{transformer_encoder_layer.1} parent=1 // pred_region
      %s14 = ssub.s32 256, 256
      %15 = vsyncadd [#allocation3], %s14
      %s16 = sshll.u32 [#allocation2], 4
      %s17 = int_to_ptr.vmem [resolvable:$true] %s16
      %22 = dma.hbm_to_vmem [thread:$0]  %s0, 256, %s17, [#allocation3], 128, 128, 8
    $region5: #{transformer_encoder_layer.1} parent=1 // pred_fallthru
      _
    // Predicated region
    $region6: #{transformer_encoder_layer.1} parent=1 // pred_check
      _
    $region7: #{transformer_encoder_layer.1} parent=1 // pred_check_branch
      %24 = sbr.rel (0) target = $region9
    $region8: #{transformer_encoder_layer.1} parent=1 // pred_region
      %s26 = ssub.s32 2560, 2560
      %27 = vsyncadd [#allocation6], %s26
      %s28 = sshll.u32 [#allocation5], 4
      %s29 = int_to_ptr.vmem [resolvable:$true] %s28
      %34 = dma.hbm_to_vmem [thread:$0]  %s1, 2560, %s29, [#allocation6], 128, 128, 8
    $region9: #{transformer_encoder_layer.1} parent=1 // pred_fallthru
      _
    // Predicated region
    $region10: #{transformer_encoder_layer.1} parent=1 // pred_check
      _
    $region11: #{transformer_encoder_layer.1} parent=1 // pred_check_branch
      %36 = sbr.rel (0) target = $region13
    $region12: #{transformer_encoder_layer.1} parent=1 // pred_region
      %s38 = ssub.s32 128, 128
      %39 = vsyncadd [#allocation6], %s38
      %s41 = sshll.u32 [#allocation7], 4
      %s42 = int_to_ptr.vmem [resolvable:$true] %s41
      %44 = dma.hbm_to_vmem [thread:$0]  %s2, 128, %s42, [#allocation6]
    $region13: #{transformer_encoder_layer.1} parent=1 // pred_fallthru
      _
    // Predicated region
    $region14: #{transformer_encoder_layer.1} parent=1 // pred_check
      _
    $region15: #{transformer_encoder_layer.1} parent=1 // pred_check_branch
      %46 = sbr.rel (0) target = $region17
    $region16: #{transformer_encoder_layer.1} parent=1 // pred_region
      %47 = dma.done [#allocation3], 256
    $region17: #{transformer_encoder_layer.1} parent=1 // pred_fallthru
      _
    // Predicated region
    $region18: #{transformer_encoder_layer.1} parent=1 // pred_check
      _
    $region19: #{transformer_encoder_layer.1} parent=1 // pred_check_branch
      %49 = sbr.rel (0) target = $region21
    $region20: #{transformer_encoder_layer.1} parent=1 // pred_region
      %50 = dma.done [#allocation6], 2560
    $region21: #{transformer_encoder_layer.1} parent=1 // pred_fallthru
      _
    // Predicated region
    $region22: #{transformer_encoder_layer.1} parent=1 // pred_check
      _
    $region23: #{transformer_encoder_layer.1} parent=1 // pred_check_branch
      %52 = sbr.rel (0) target = $region25
    $region24: #{transformer_encoder_layer.1} parent=1 // pred_region
      %53 = dma.done [#allocation6], 128
    $region25: #{transformer_encoder_layer.1} parent=1 // pred_fallthru
      _
    %v54 = vld [vmem:[#allocation2] sm:$0xff]
    %v55 = vld [vmem:[#allocation2 + $0x8] sm:$0xff]
    %v56 = vld [vmem:[#allocation5] sm:$0xff]
    %v57 = vld [vmem:[#allocation5 + $0x8] sm:$0xff]
    %v58 = vld [vmem:[#allocation5 + $0x10] sm:$0xff]
    %v59 = vld [vmem:[#allocation5 + $0x18] sm:$0xff]
    %v60 = vld [vmem:[#allocation5 + $0x20] sm:$0xff]
    %v61 = vld [vmem:[#allocation5 + $0x28] sm:$0xff]
    %v62 = vld [vmem:[#allocation5 + $0x30] sm:$0xff]
    %v63 = vld [vmem:[#allocation5 + $0x38] sm:$0xff]
    %v64 = vld [vmem:[#allocation5 + $0x40] sm:$0xff]
    %v65 = vld [vmem:[#allocation5 + $0x48] sm:$0xff]
    %v66 = vld [vmem:[#allocation5 + $0x50] sm:$0xff]
    %v67 = vld [vmem:[#allocation5 + $0x58] sm:$0xff]
    %v68 = vld [vmem:[#allocation5 + $0x60] sm:$0xff]
    %v69 = vld [vmem:[#allocation5 + $0x68] sm:$0xff]
    %v70 = vld [vmem:[#allocation5 + $0x70] sm:$0xff]
    %v71 = vld [vmem:[#allocation5 + $0x78] sm:$0xff]
    %v72 = vld [vmem:[#allocation5 + $0x80] sm:$0xff]
    %v73 = vld [vmem:[#allocation5 + $0x88] sm:$0xff]
    %v74 = vld [vmem:[#allocation5 + $0x90] sm:$0xff]
    %v75 = vld [vmem:[#allocation5 + $0x98] sm:$0xff]
    %v76 = vld [vmem:[#allocation7] sm:$0x1]
    %v77 = vld [vmem:[#allocation7 + $0x1] sm:$0x1]
    %v78 = vld [vmem:[#allocation7 + $0x2] sm:$0x1]
    %v79 = vld [vmem:[#allocation7 + $0x3] sm:$0x1]
    %v80 = vld [vmem:[#allocation7 + $0x4] sm:$0x1]
    %v81 = vld [vmem:[#allocation7 + $0x5] sm:$0x1]
    %v82 = vld [vmem:[#allocation7 + $0x6] sm:$0x1]
    %v83 = vld [vmem:[#allocation7 + $0x7] sm:$0x1]
    %v84 = vlaneseq
    %v85 = vshrl.u32 %v84, 7
    %v86 = vsub.s32 0, %v85
    %v87 = vrot.slane %v76, %v86
    %vm88 = vcmask 261120
    %v90 = vsel %vm88, %v54, 0
    %v93 = vsel %vm88, %v55, 0
    %95 = vmatprep.subr.mxu0 0.0
    %96 = vmatpush1.msra.mxu0 0.0
    %97 = vmatprep.subr.mxu0 0.0
    %98 = vmatpush1.msra.mxu0 0.0
    %99 = vmatprep.subr.mxu0 0.0
    %100 = vmatpush1.msra.mxu0 0.0
    %101 = vmatprep.subr.mxu0 0.0
    %102 = vmatpush1.msra.mxu0 0.0
    %103 = vmatprep.subr.mxu0 0.0
    %104 = vmatpush1.msra.mxu0 0.0
    %105 = vmatprep.subr.mxu0 0.0
    %106 = vmatpush1.msra.mxu0 0.0
    %107 = vmatprep.subr.mxu0 0.0
    %108 = vmatpush1.msra.mxu0 0.0
    %109 = vmatprep.subr.mxu0 0.0
    %110 = vmatpush1.msra.mxu0 0.0
    %111 = vmatprep.subr.mxu0 0.0
    %112 = vmatpush1.msra.mxu0 0.0
    %113 = vmatprep.subr.mxu0 0.0
    %114 = vmatpush1.msra.mxu0 0.0
    %115 = vmatprep.subr.mxu0 0.0
    %116 = vmatpush1.msra.mxu0 0.0
    %117 = vmatprep.subr.mxu0 0.0
    %118 = vmatpush1.msra.mxu0 0.0
    %119 = vmatprep.subr.mxu0 0.0
    %120 = vmatpush1.msra.mxu0 %v63
    %121 = vmatprep.subr.mxu0 0.0
    %122 = vmatpush1.msra.mxu0 %v62
    %123 = vmatprep.subr.mxu0 0.0
    %124 = vmatpush1.msra.mxu0 %v61
    %125 = vmatprep.subr.mxu0 0.0
    %126 = vmatpush1.msra.mxu0 %v60
    %127 = vmatprep.subr.mxu0 0.0
    %128 = vmatpush2.msra.mxu0 0.0
    %129 = vmatprep.subr.mxu0 0.0
    %130 = vmatpush2.msra.mxu0 0.0
    %131 = vmatprep.subr.mxu0 0.0
    %132 = vmatpush2.msra.mxu0 0.0
    %133 = vmatprep.subr.mxu0 0.0
    %134 = vmatpush2.msra.mxu0 0.0
    %135 = vmatprep.subr.mxu0 0.0
    %136 = vmatpush2.msra.mxu0 0.0
    %137 = vmatprep.subr.mxu0 0.0
    %138 = vmatpush2.msra.mxu0 0.0
    %139 = vmatprep.subr.mxu0 0.0
    %140 = vmatpush2.msra.mxu0 0.0
    %141 = vmatprep.subr.mxu0 0.0
    %142 = vmatpush2.msra.mxu0 0.0
    %143 = vmatprep.subr.mxu0 0.0
    %144 = vmatpush2.msra.mxu0 0.0
    %145 = vmatprep.subr.mxu0 0.0
    %146 = vmatpush2.msra.mxu0 0.0
    %147 = vmatprep.subr.mxu0 0.0
    %148 = vmatpush2.msra.mxu0 0.0
    %149 = vmatprep.subr.mxu0 0.0
    %150 = vmatpush2.msra.mxu0 0.0
    %151 = vmatprep.subr.mxu0 0.0
    %152 = vmatpush2.msra.mxu0 0.0
    %153 = vmatprep.subr.mxu0 0.0
    %154 = vmatpush2.msra.mxu0 0.0
    %155 = vmatprep.subr.mxu0 0.0
    %156 = vmatpush2.msra.mxu0 0.0
    %157 = vmatprep.subr.mxu0 0.0
    %158 = vmatpush2.msra.mxu0 0.0
    %159 = vmatprep.mubr.f32.mxu0 0.0
    %160 = vmatmul.mubr.f32.gmra.mxu0 %v90
    %v161 = vpop.f32.mrf.mxu0
    %v162 = vadd.f32 %v87, %v161
    %v163 = vpop.f32.mrf.mxu0
    %164 = vmatprep.mubr.f32.mxu0 0.0
    %165 = vmatmul.mubr.f32.gmra.mxu0 %v93
    %v166 = vpop.f32.mrf.mxu0
    %v167 = vadd.f32 %v87, %v166
    %v168 = vpop.f32.mrf.mxu0
    %169 = vdwg.mxu0
    %170 = vmatprep.subr.mxu0 0.0
    %171 = vmatpush1.msra.mxu0 0.0
    %172 = vmatprep.subr.mxu0 0.0
    %173 = vmatpush1.msra.mxu0 0.0
    %174 = vmatprep.subr.mxu0 0.0
    %175 = vmatpush1.msra.mxu0 0.0
    %176 = vmatprep.subr.mxu0 0.0
    %177 = vmatpush1.msra.mxu0 0.0
    %178 = vmatprep.subr.mxu0 0.0
    %179 = vmatpush1.msra.mxu0 0.0
    %180 = vmatprep.subr.mxu0 0.0
    %181 = vmatpush1.msra.mxu0 0.0
    %182 = vmatprep.subr.mxu0 0.0
    %183 = vmatpush1.msra.mxu0 0.0
    %184 = vmatprep.subr.mxu0 0.0
    %185 = vmatpush1.msra.mxu0 0.0
    %186 = vmatprep.subr.mxu0 0.0
    %187 = vmatpush1.msra.mxu0 0.0
    %188 = vmatprep.subr.mxu0 0.0
    %189 = vmatpush1.msra.mxu0 0.0
    %190 = vmatprep.subr.mxu0 0.0
    %191 = vmatpush1.msra.mxu0 0.0
    %192 = vmatprep.subr.mxu0 0.0
    %193 = vmatpush1.msra.mxu0 0.0
    %194 = vmatprep.subr.mxu0 0.0
    %195 = vmatpush1.msra.mxu0 %v59
    %196 = vmatprep.subr.mxu0 0.0
    %197 = vmatpush1.msra.mxu0 %v58
    %198 = vmatprep.subr.mxu0 0.0
    %199 = vmatpush1.msra.mxu0 %v57
    %200 = vmatprep.subr.mxu0 0.0
    %201 = vmatpush1.msra.mxu0 %v56
    %202 = vmatprep.subr.mxu0 0.0
    %203 = vmatpush2.msra.mxu0 0.0
    %204 = vmatprep.subr.mxu0 0.0
    %205 = vmatpush2.msra.mxu0 0.0
    %206 = vmatprep.subr.mxu0 0.0
    %207 = vmatpush2.msra.mxu0 0.0
    %208 = vmatprep.subr.mxu0 0.0
    %209 = vmatpush2.msra.mxu0 0.0
    %210 = vmatprep.subr.mxu0 0.0
    %211 = vmatpush2.msra.mxu0 0.0
    %212 = vmatprep.subr.mxu0 0.0
    %213 = vmatpush2.msra.mxu0 0.0
    %214 = vmatprep.subr.mxu0 0.0
    %215 = vmatpush2.msra.mxu0 0.0
    %216 = vmatprep.subr.mxu0 0.0
    %217 = vmatpush2.msra.mxu0 0.0
    %218 = vmatprep.subr.mxu0 0.0
    %219 = vmatpush2.msra.mxu0 0.0
    %220 = vmatprep.subr.mxu0 0.0
    %221 = vmatpush2.msra.mxu0 0.0
    %222 = vmatprep.subr.mxu0 0.0
    %223 = vmatpush2.msra.mxu0 0.0
    %224 = vmatprep.subr.mxu0 0.0
    %225 = vmatpush2.msra.mxu0 0.0
    %226 = vmatprep.subr.mxu0 0.0
    %227 = vmatpush2.msra.mxu0 0.0
    %228 = vmatprep.subr.mxu0 0.0
    %229 = vmatpush2.msra.mxu0 0.0
    %230 = vmatprep.subr.mxu0 0.0
    %231 = vmatpush2.msra.mxu0 0.0
    %232 = vmatprep.subr.mxu0 0.0
    %233 = vmatpush2.msra.mxu0 0.0
    %234 = vmatprep.mubr.f32.mxu0 0.0
    %235 = vmatmul.mubr.f32.gmra.mxu0 %v90
    %v236 = vpop.f32.mrf.mxu0
    %v237 = vadd.f32 0.0, %v236
    %v238 = vpop.f32.mrf.mxu0
    %239 = vmatprep.mubr.f32.mxu0 0.0
    %240 = vmatmul.mubr.f32.gmra.mxu0 %v93
    %v241 = vpop.f32.mrf.mxu0
    %v242 = vadd.f32 0.0, %v241
    %v243 = vpop.f32.mrf.mxu0
    %244 = vdwg.mxu0
    %v245 = vlaneseq
    %v246 = vand.u32 %v245, 127
    %vm247 = vcmp.ge.s32.totalorder %v246, 0
    %vm248 = vcmp.lt.s32.totalorder %v246, 8
    %vm249 = vmand %vm247, %vm248
    %v250 = vsel %vm249, %v162, 0.0
    %v251 = vsel %vm249, %v167, 0.0
    %vm252 = vcmp.ge.s32.totalorder %v246, 8
    %vm253 = vcmp.lt.s32.totalorder %v246, 16
    %vm254 = vmand %vm252, %vm253
    %v255 = vsel %vm254, %v162, 0.0
    %v256 = vsel %vm254, %v167, 0.0
    %vm257 = vcmp.ge.s32.totalorder %v246, 16
    %vm258 = vcmp.lt.s32.totalorder %v246, 24
    %vm259 = vmand %vm257, %vm258
    %v260 = vsel %vm259, %v162, 0.0
    %v261 = vsel %vm259, %v167, 0.0
    %vm262 = vcmp.ge.s32.totalorder %v246, 24
    %vm263 = vcmp.lt.s32.totalorder %v246, 32
    %vm264 = vmand %vm262, %vm263
    %v265 = vsel %vm264, %v162, 0.0
    %v266 = vsel %vm264, %v167, 0.0
    %269 = vrot.lane.b32.xlu0 %v162, 96
    %v270 = vpop.permute.xlu0 %269
    %271 = vrot.lane.b32.xlu0 %v167, 96
    %v272 = vpop.permute.xlu0 %271
    %v274 = vsel %vm88, %v250, 0
    %v277 = vsel %vm88, %v251, 0
    %v280 = vsel %vm88, %v255, 0
    %v283 = vsel %vm88, %v256, 0
    %v286 = vsel %vm88, %v260, 0
    %v289 = vsel %vm88, %v261, 0
    %v292 = vsel %vm88, %v265, 0
    %v295 = vsel %vm88, %v266, 0
    %v297 = vsel %vm88, %v270, 0
    %v299 = vsel %vm88, %v272, 0
    %301 = vmatprep.subr.mxu0 0.0
    %302 = vmatpush1.xpose.msra.mxu0 0.0
    %303 = vmatprep.subr.mxu0 0.0
    %304 = vmatpush1.xpose.msra.mxu0 0.0
    %305 = vmatprep.subr.mxu0 0.0
    %306 = vmatpush1.xpose.msra.mxu0 0.0
    %307 = vmatprep.subr.mxu0 0.0
    %308 = vmatpush1.xpose.msra.mxu0 0.0
    %309 = vmatprep.subr.mxu0 0.0
    %310 = vmatpush1.xpose.msra.mxu0 0.0
    %311 = vmatprep.subr.mxu0 0.0
    %312 = vmatpush1.xpose.msra.mxu0 0.0
    %313 = vmatprep.subr.mxu0 0.0
    %314 = vmatpush1.xpose.msra.mxu0 0.0
    %315 = vmatprep.subr.mxu0 0.0
    %316 = vmatpush1.xpose.msra.mxu0 0.0
    %317 = vmatprep.subr.mxu0 0.0
    %318 = vmatpush1.xpose.msra.mxu0 0.0
    %319 = vmatprep.subr.mxu0 0.0
    %320 = vmatpush1.xpose.msra.mxu0 0.0
    %321 = vmatprep.subr.mxu0 0.0
    %322 = vmatpush1.xpose.msra.mxu0 0.0
    %323 = vmatprep.subr.mxu0 0.0
    %324 = vmatpush1.xpose.msra.mxu0 0.0
    %325 = vmatprep.subr.mxu0 0.0
    %326 = vmatpush1.xpose.msra.mxu0 0.0
    %327 = vmatprep.subr.mxu0 0.0
    %328 = vmatpush1.xpose.msra.mxu0 0.0
    %329 = vmatprep.subr.mxu0 0.0
    %330 = vmatpush1.xpose.msra.mxu0 %v299
    %331 = vmatprep.subr.mxu0 0.0
    %332 = vmatpush1.xpose.msra.mxu0 %v297
    %333 = vmatprep.subr.mxu0 0.0
    %334 = vmatpush2.xpose.msra.mxu0 0.0
    %335 = vmatprep.subr.mxu0 0.0
    %336 = vmatpush2.xpose.msra.mxu0 0.0
    %337 = vmatprep.subr.mxu0 0.0
    %338 = vmatpush2.xpose.msra.mxu0 0.0
    %339 = vmatprep.subr.mxu0 0.0
    %340 = vmatpush2.xpose.msra.mxu0 0.0
    %341 = vmatprep.subr.mxu0 0.0
    %342 = vmatpush2.xpose.msra.mxu0 0.0
    %343 = vmatprep.subr.mxu0 0.0
    %344 = vmatpush2.xpose.msra.mxu0 0.0
    %345 = vmatprep.subr.mxu0 0.0
    %346 = vmatpush2.xpose.msra.mxu0 0.0
    %347 = vmatprep.subr.mxu0 0.0
    %348 = vmatpush2.xpose.msra.mxu0 0.0
    %349 = vmatprep.subr.mxu0 0.0
    %350 = vmatpush2.xpose.msra.mxu0 0.0
    %351 = vmatprep.subr.mxu0 0.0
    %352 = vmatpush2.xpose.msra.mxu0 0.0
    %353 = vmatprep.subr.mxu0 0.0
    %354 = vmatpush2.xpose.msra.mxu0 0.0
    %355 = vmatprep.subr.mxu0 0.0
    %356 = vmatpush2.xpose.msra.mxu0 0.0
    %357 = vmatprep.subr.mxu0 0.0
    %358 = vmatpush2.xpose.msra.mxu0 0.0
    %359 = vmatprep.subr.mxu0 0.0
    %360 = vmatpush2.xpose.msra.mxu0 0.0
    %361 = vmatprep.subr.mxu0 0.0
    %362 = vmatpush2.xpose.msra.mxu0 0.0
    %363 = vmatprep.subr.mxu0 0.0
    %364 = vmatpush2.xpose.msra.mxu0 0.0
    %365 = vmatprep.mubr.f32.mxu0 0.0
    %366 = vmatmul.mubr.f32.gmra.mxu0 %v274
    %v367 = vpop.f32.mrf.mxu0
    %v368 = vadd.f32 0.0, %v367
    %v369 = vpop.f32.mrf.mxu0
    %370 = vmatprep.mubr.f32.mxu0 0.0
    %371 = vmatmul.mubr.f32.gmra.mxu0 %v277
    %v372 = vpop.f32.mrf.mxu0
    %v373 = vadd.f32 0.0, %v372
    %v374 = vpop.f32.mrf.mxu0
    %375 = vmatprep.mubr.f32.mxu0 0.0
    %376 = vmatmul.mubr.f32.gmra.mxu0 %v280
    %v377 = vpop.f32.mrf.mxu0
    %v378 = vadd.f32 0.0, %v377
    %v379 = vpop.f32.mrf.mxu0
    %380 = vmatprep.mubr.f32.mxu0 0.0
    %381 = vmatmul.mubr.f32.gmra.mxu0 %v283
    %v382 = vpop.f32.mrf.mxu0
    %v383 = vadd.f32 0.0, %v382
    %v384 = vpop.f32.mrf.mxu0
    %385 = vmatprep.mubr.f32.mxu0 0.0
    %386 = vmatmul.mubr.f32.gmra.mxu0 %v286
    %v387 = vpop.f32.mrf.mxu0
    %v388 = vadd.f32 0.0, %v387
    %v389 = vpop.f32.mrf.mxu0
    %390 = vmatprep.mubr.f32.mxu0 0.0
    %391 = vmatmul.mubr.f32.gmra.mxu0 %v289
    %v392 = vpop.f32.mrf.mxu0
    %v393 = vadd.f32 0.0, %v392
    %v394 = vpop.f32.mrf.mxu0
    %395 = vmatprep.mubr.f32.mxu0 0.0
    %396 = vmatmul.mubr.f32.gmra.mxu0 %v292
    %v397 = vpop.f32.mrf.mxu0
    %v398 = vadd.f32 0.0, %v397
    %v399 = vpop.f32.mrf.mxu0
    %400 = vmatprep.mubr.f32.mxu0 0.0
    %401 = vmatmul.mubr.f32.gmra.mxu0 %v295
    %v402 = vpop.f32.mrf.mxu0
    %v403 = vadd.f32 0.0, %v402
    %v404 = vpop.f32.mrf.mxu0
    %405 = vdwg.mxu0
    %v406 = vlaneseq
    %v407 = vshrl.u32 %v406, 7
    %v408 = vadd.s32 %v407, 8
    %v409 = vadd.s32 %v407, 16
    %v410 = vadd.s32 %v407, 24
    %v411 = vadd.s32 %v407, 32
    %v412 = vadd.s32 %v407, 40
    %v413 = vadd.s32 %v407, 48
    %v414 = vadd.s32 %v407, 56
    %v415 = vand.u32 %v407, 1
    %v416 = vand.u32 %v408, 1
    %v417 = vand.u32 %v409, 1
    %v418 = vand.u32 %v410, 1
    %v419 = vand.u32 %v411, 1
    %v420 = vand.u32 %v412, 1
    %v421 = vand.u32 %v413, 1
    %v422 = vand.u32 %v414, 1
    %v423 = vand.u32 %v246, 1
    %vm424 = vcmp.eq.s32.totalorder %v415, %v423
    %vm425 = vcmp.eq.s32.totalorder %v416, %v423
    %vm426 = vcmp.eq.s32.totalorder %v417, %v423
    %vm427 = vcmp.eq.s32.totalorder %v418, %v423
    %vm428 = vcmp.eq.s32.totalorder %v419, %v423
    %vm429 = vcmp.eq.s32.totalorder %v420, %v423
    %vm430 = vcmp.eq.s32.totalorder %v421, %v423
    %vm431 = vcmp.eq.s32.totalorder %v422, %v423
    %v432 = vsel %vm424, %v368, -1e+30
    %v433 = vsel %vm425, %v373, -1e+30
    %v434 = vsel %vm426, %v378, -1e+30
    %v435 = vsel %vm427, %v383, -1e+30
    %v436 = vsel %vm428, %v388, -1e+30
    %v437 = vsel %vm429, %v393, -1e+30
    %v438 = vsel %vm430, %v398, -1e+30
    %v439 = vsel %vm431, %v403, -1e+30
    %vm440 = vcmask 130048
    %v441 = vsel %vm440, %v432, -inf
    %442 = vmax.xlane.f32.xlu0 %v441
    %v443 = vpop.xlane.xlu0 %442
    %v444 = vsel %vm440, %v433, -inf
    %445 = vmax.xlane.f32.xlu0 %v444
    %v446 = vpop.xlane.xlu0 %445
    %v447 = vsel %vm440, %v434, -inf
    %448 = vmax.xlane.f32.xlu0 %v447
    %v449 = vpop.xlane.xlu0 %448
    %v450 = vsel %vm440, %v435, -inf
    %451 = vmax.xlane.f32.xlu0 %v450
    %v452 = vpop.xlane.xlu0 %451
    %v453 = vsel %vm440, %v436, -inf
    %454 = vmax.xlane.f32.xlu0 %v453
    %v455 = vpop.xlane.xlu0 %454
    %v456 = vsel %vm440, %v437, -inf
    %457 = vmax.xlane.f32.xlu0 %v456
    %v458 = vpop.xlane.xlu0 %457
    %v459 = vsel %vm440, %v438, -inf
    %460 = vmax.xlane.f32.xlu0 %v459
    %v461 = vpop.xlane.xlu0 %460
    %v462 = vsel %vm440, %v439, -inf
    %463 = vmax.xlane.f32.xlu0 %v462
    %v464 = vpop.xlane.xlu0 %463
    %v465 = vsub.f32 %v432, %v443
    %v466 = vsub.f32 %v433, %v446
    %v467 = vsub.f32 %v434, %v449
    %v468 = vsub.f32 %v435, %v452
    %v469 = vsub.f32 %v436, %v455
    %v470 = vsub.f32 %v437, %v458
    %v471 = vsub.f32 %v438, %v461
    %v472 = vsub.f32 %v439, %v464
    %v473 = vmul.f32 %v465, 1.442695
    %v474 = vpow.pop %v473
    %v475 = vmul.f32 %v466, 1.442695
    %v476 = vpow.pop %v475
    %v477 = vmul.f32 %v467, 1.442695
    %v478 = vpow.pop %v477
    %v479 = vmul.f32 %v468, 1.442695
    %v480 = vpow.pop %v479
    %v481 = vmul.f32 %v469, 1.442695
    %v482 = vpow.pop %v481
    %v483 = vmul.f32 %v470, 1.442695
    %v484 = vpow.pop %v483
    %v485 = vmul.f32 %v471, 1.442695
    %v486 = vpow.pop %v485
    %v487 = vmul.f32 %v472, 1.442695
    %v488 = vpow.pop %v487
    %v489 = vsel %vm440, %v474, 0.0
    %490 = vadd.xlane.f32.xlu0 %v489
    %v491 = vpop.xlane.xlu0 %490
    %v492 = vsel %vm440, %v476, 0.0
    %493 = vadd.xlane.f32.xlu0 %v492
    %v494 = vpop.xlane.xlu0 %493
    %v495 = vsel %vm440, %v478, 0.0
    %496 = vadd.xlane.f32.xlu0 %v495
    %v497 = vpop.xlane.xlu0 %496
    %v498 = vsel %vm440, %v480, 0.0
    %499 = vadd.xlane.f32.xlu0 %v498
    %v500 = vpop.xlane.xlu0 %499
    %v501 = vsel %vm440, %v482, 0.0
    %502 = vadd.xlane.f32.xlu0 %v501
    %v503 = vpop.xlane.xlu0 %502
    %v504 = vsel %vm440, %v484, 0.0
    %505 = vadd.xlane.f32.xlu0 %v504
    %v506 = vpop.xlane.xlu0 %505
    %v507 = vsel %vm440, %v486, 0.0
    %508 = vadd.xlane.f32.xlu0 %v507
    %v509 = vpop.xlane.xlu0 %508
    %v510 = vsel %vm440, %v488, 0.0
    %511 = vadd.xlane.f32.xlu0 %v510
    %v512 = vpop.xlane.xlu0 %511
    %v513 = vrcp.pop %v491
    %v514 = vmul.f32 %v474, %v513
    %v515 = vrcp.pop %v494
    %v516 = vmul.f32 %v476, %v515
    %v517 = vrcp.pop %v497
    %v518 = vmul.f32 %v478, %v517
    %v519 = vrcp.pop %v500
    %v520 = vmul.f32 %v480, %v519
    %v521 = vrcp.pop %v503
    %v522 = vmul.f32 %v482, %v521
    %v523 = vrcp.pop %v506
    %v524 = vmul.f32 %v484, %v523
    %v525 = vrcp.pop %v509
    %v526 = vmul.f32 %v486, %v525
    %v527 = vrcp.pop %v512
    %v528 = vmul.f32 %v488, %v527
    %531 = vrot.lane.b32.xlu0 %v237, 96
    %v532 = vpop.permute.xlu0 %531
    %533 = vrot.lane.b32.xlu0 %v242, 96
    %v534 = vpop.permute.xlu0 %533
    %v538 = vsel %vm440, %v518, 0
    %v541 = vsel %vm440, %v520, 0
    %543 = vmatprep.subr.mxu0 0.0
    %544 = vmatpush1.msra.mxu0 0.0
    %545 = vmatprep.subr.mxu0 0.0
    %546 = vmatpush1.msra.mxu0 0.0
    %547 = vmatprep.subr.mxu0 0.0
    %548 = vmatpush1.msra.mxu0 0.0
    %549 = vmatprep.subr.mxu0 0.0
    %550 = vmatpush1.msra.mxu0 0.0
    %551 = vmatprep.subr.mxu0 0.0
    %552 = vmatpush1.msra.mxu0 0.0
    %553 = vmatprep.subr.mxu0 0.0
    %554 = vmatpush1.msra.mxu0 0.0
    %555 = vmatprep.subr.mxu0 0.0
    %556 = vmatpush1.msra.mxu0 0.0
    %557 = vmatprep.subr.mxu0 0.0
    %558 = vmatpush1.msra.mxu0 0.0
    %559 = vmatprep.subr.mxu0 0.0
    %560 = vmatpush1.msra.mxu0 0.0
    %561 = vmatprep.subr.mxu0 0.0
    %562 = vmatpush1.msra.mxu0 0.0
    %563 = vmatprep.subr.mxu0 0.0
    %564 = vmatpush1.msra.mxu0 0.0
    %565 = vmatprep.subr.mxu0 0.0
    %566 = vmatpush1.msra.mxu0 0.0
    %567 = vmatprep.subr.mxu0 0.0
    %568 = vmatpush1.msra.mxu0 0.0
    %569 = vmatprep.subr.mxu0 0.0
    %570 = vmatpush1.msra.mxu0 0.0
    %571 = vmatprep.subr.mxu0 0.0
    %572 = vmatpush1.msra.mxu0 %v534
    %573 = vmatprep.subr.mxu0 0.0
    %574 = vmatpush1.msra.mxu0 %v532
    %575 = vmatprep.subr.mxu0 0.0
    %576 = vmatpush2.msra.mxu0 0.0
    %577 = vmatprep.subr.mxu0 0.0
    %578 = vmatpush2.msra.mxu0 0.0
    %579 = vmatprep.subr.mxu0 0.0
    %580 = vmatpush2.msra.mxu0 0.0
    %581 = vmatprep.subr.mxu0 0.0
    %582 = vmatpush2.msra.mxu0 0.0
    %583 = vmatprep.subr.mxu0 0.0
    %584 = vmatpush2.msra.mxu0 0.0
    %585 = vmatprep.subr.mxu0 0.0
    %586 = vmatpush2.msra.mxu0 0.0
    %587 = vmatprep.subr.mxu0 0.0
    %588 = vmatpush2.msra.mxu0 0.0
    %589 = vmatprep.subr.mxu0 0.0
    %590 = vmatpush2.msra.mxu0 0.0
    %591 = vmatprep.subr.mxu0 0.0
    %592 = vmatpush2.msra.mxu0 0.0
    %593 = vmatprep.subr.mxu0 0.0
    %594 = vmatpush2.msra.mxu0 0.0
    %595 = vmatprep.subr.mxu0 0.0
    %596 = vmatpush2.msra.mxu0 0.0
    %597 = vmatprep.subr.mxu0 0.0
    %598 = vmatpush2.msra.mxu0 0.0
    %599 = vmatprep.subr.mxu0 0.0
    %600 = vmatpush2.msra.mxu0 0.0
    %601 = vmatprep.subr.mxu0 0.0
    %602 = vmatpush2.msra.mxu0 0.0
    %603 = vmatprep.subr.mxu0 0.0
    %604 = vmatpush2.msra.mxu0 0.0
    %605 = vmatprep.subr.mxu0 0.0
    %606 = vmatpush2.msra.mxu0 0.0
    %607 = vmatprep.mubr.f32.mxu0 0.0
    %608 = vmatmul.mubr.f32.gmra.mxu0 %v538
    %v609 = vpop.f32.mrf.mxu0
    %v610 = vadd.f32 0.0, %v609
    %v611 = vpop.f32.mrf.mxu0
    %612 = vmatprep.mubr.f32.mxu0 0.0
    %613 = vmatmul.mubr.f32.gmra.mxu0 %v541
    %v614 = vpop.f32.mrf.mxu0
    %v615 = vadd.f32 0.0, %v614
    %v616 = vpop.f32.mrf.mxu0
    %617 = vdwg.mxu0
    %v619 = vsel %vm440, %v514, 0
    %v622 = vsel %vm440, %v516, 0
    %624 = vmatprep.subr.mxu0 0.0
    %625 = vmatpush1.msra.mxu0 0.0
    %626 = vmatprep.subr.mxu0 0.0
    %627 = vmatpush1.msra.mxu0 0.0
    %628 = vmatprep.subr.mxu0 0.0
    %629 = vmatpush1.msra.mxu0 0.0
    %630 = vmatprep.subr.mxu0 0.0
    %631 = vmatpush1.msra.mxu0 0.0
    %632 = vmatprep.subr.mxu0 0.0
    %633 = vmatpush1.msra.mxu0 0.0
    %634 = vmatprep.subr.mxu0 0.0
    %635 = vmatpush1.msra.mxu0 0.0
    %636 = vmatprep.subr.mxu0 0.0
    %637 = vmatpush1.msra.mxu0 0.0
    %638 = vmatprep.subr.mxu0 0.0
    %639 = vmatpush1.msra.mxu0 0.0
    %640 = vmatprep.subr.mxu0 0.0
    %641 = vmatpush1.msra.mxu0 0.0
    %642 = vmatprep.subr.mxu0 0.0
    %643 = vmatpush1.msra.mxu0 0.0
    %644 = vmatprep.subr.mxu0 0.0
    %645 = vmatpush1.msra.mxu0 0.0
    %646 = vmatprep.subr.mxu0 0.0
    %647 = vmatpush1.msra.mxu0 0.0
    %648 = vmatprep.subr.mxu0 0.0
    %649 = vmatpush1.msra.mxu0 0.0
    %650 = vmatprep.subr.mxu0 0.0
    %651 = vmatpush1.msra.mxu0 0.0
    %652 = vmatprep.subr.mxu0 0.0
    %653 = vmatpush1.msra.mxu0 %v242
    %654 = vmatprep.subr.mxu0 0.0
    %655 = vmatpush1.msra.mxu0 %v237
    %656 = vmatprep.subr.mxu0 0.0
    %657 = vmatpush2.msra.mxu0 0.0
    %658 = vmatprep.subr.mxu0 0.0
    %659 = vmatpush2.msra.mxu0 0.0
    %660 = vmatprep.subr.mxu0 0.0
    %661 = vmatpush2.msra.mxu0 0.0
    %662 = vmatprep.subr.mxu0 0.0
    %663 = vmatpush2.msra.mxu0 0.0
    %664 = vmatprep.subr.mxu0 0.0
    %665 = vmatpush2.msra.mxu0 0.0
    %666 = vmatprep.subr.mxu0 0.0
    %667 = vmatpush2.msra.mxu0 0.0
    %668 = vmatprep.subr.mxu0 0.0
    %669 = vmatpush2.msra.mxu0 0.0
    %670 = vmatprep.subr.mxu0 0.0
    %671 = vmatpush2.msra.mxu0 0.0
    %672 = vmatprep.subr.mxu0 0.0
    %673 = vmatpush2.msra.mxu0 0.0
    %674 = vmatprep.subr.mxu0 0.0
    %675 = vmatpush2.msra.mxu0 0.0
    %676 = vmatprep.subr.mxu0 0.0
    %677 = vmatpush2.msra.mxu0 0.0
    %678 = vmatprep.subr.mxu0 0.0
    %679 = vmatpush2.msra.mxu0 0.0
    %680 = vmatprep.subr.mxu0 0.0
    %681 = vmatpush2.msra.mxu0 0.0
    %682 = vmatprep.subr.mxu0 0.0
    %683 = vmatpush2.msra.mxu0 0.0
    %684 = vmatprep.subr.mxu0 0.0
    %685 = vmatpush2.msra.mxu0 0.0
    %686 = vmatprep.subr.mxu0 0.0
    %687 = vmatpush2.msra.mxu0 0.0
    %688 = vmatprep.mubr.f32.mxu0 0.0
    %689 = vmatmul.mubr.f32.gmra.mxu0 %v619
    %v690 = vpop.f32.mrf.mxu0
    %v691 = vadd.f32 %v610, %v690
    %v692 = vpop.f32.mrf.mxu0
    %693 = vmatprep.mubr.f32.mxu0 0.0
    %694 = vmatmul.mubr.f32.gmra.mxu0 %v622
    %v695 = vpop.f32.mrf.mxu0
    %v696 = vadd.f32 %v615, %v695
    %v697 = vpop.f32.mrf.mxu0
    %698 = vdwg.mxu0
    %699 = vrot.lane.b32.xlu0 %v237, 64
    %v700 = vpop.permute.xlu0 %699
    %701 = vrot.lane.b32.xlu0 %v242, 64
    %v702 = vpop.permute.xlu0 %701
    %v706 = vsel %vm440, %v522, 0
    %v709 = vsel %vm440, %v524, 0
    %711 = vmatprep.subr.mxu0 0.0
    %712 = vmatpush1.msra.mxu0 0.0
    %713 = vmatprep.subr.mxu0 0.0
    %714 = vmatpush1.msra.mxu0 0.0
    %715 = vmatprep.subr.mxu0 0.0
    %716 = vmatpush1.msra.mxu0 0.0
    %717 = vmatprep.subr.mxu0 0.0
    %718 = vmatpush1.msra.mxu0 0.0
    %719 = vmatprep.subr.mxu0 0.0
    %720 = vmatpush1.msra.mxu0 0.0
    %721 = vmatprep.subr.mxu0 0.0
    %722 = vmatpush1.msra.mxu0 0.0
    %723 = vmatprep.subr.mxu0 0.0
    %724 = vmatpush1.msra.mxu0 0.0
    %725 = vmatprep.subr.mxu0 0.0
    %726 = vmatpush1.msra.mxu0 0.0
    %727 = vmatprep.subr.mxu0 0.0
    %728 = vmatpush1.msra.mxu0 0.0
    %729 = vmatprep.subr.mxu0 0.0
    %730 = vmatpush1.msra.mxu0 0.0
    %731 = vmatprep.subr.mxu0 0.0
    %732 = vmatpush1.msra.mxu0 0.0
    %733 = vmatprep.subr.mxu0 0.0
    %734 = vmatpush1.msra.mxu0 0.0
    %735 = vmatprep.subr.mxu0 0.0
    %736 = vmatpush1.msra.mxu0 0.0
    %737 = vmatprep.subr.mxu0 0.0
    %738 = vmatpush1.msra.mxu0 0.0
    %739 = vmatprep.subr.mxu0 0.0
    %740 = vmatpush1.msra.mxu0 %v702
    %741 = vmatprep.subr.mxu0 0.0
    %742 = vmatpush1.msra.mxu0 %v700
    %743 = vmatprep.subr.mxu0 0.0
    %744 = vmatpush2.msra.mxu0 0.0
    %745 = vmatprep.subr.mxu0 0.0
    %746 = vmatpush2.msra.mxu0 0.0
    %747 = vmatprep.subr.mxu0 0.0
    %748 = vmatpush2.msra.mxu0 0.0
    %749 = vmatprep.subr.mxu0 0.0
    %750 = vmatpush2.msra.mxu0 0.0
    %751 = vmatprep.subr.mxu0 0.0
    %752 = vmatpush2.msra.mxu0 0.0
    %753 = vmatprep.subr.mxu0 0.0
    %754 = vmatpush2.msra.mxu0 0.0
    %755 = vmatprep.subr.mxu0 0.0
    %756 = vmatpush2.msra.mxu0 0.0
    %757 = vmatprep.subr.mxu0 0.0
    %758 = vmatpush2.msra.mxu0 0.0
    %759 = vmatprep.subr.mxu0 0.0
    %760 = vmatpush2.msra.mxu0 0.0
    %761 = vmatprep.subr.mxu0 0.0
    %762 = vmatpush2.msra.mxu0 0.0
    %763 = vmatprep.subr.mxu0 0.0
    %764 = vmatpush2.msra.mxu0 0.0
    %765 = vmatprep.subr.mxu0 0.0
    %766 = vmatpush2.msra.mxu0 0.0
    %767 = vmatprep.subr.mxu0 0.0
    %768 = vmatpush2.msra.mxu0 0.0
    %769 = vmatprep.subr.mxu0 0.0
    %770 = vmatpush2.msra.mxu0 0.0
    %771 = vmatprep.subr.mxu0 0.0
    %772 = vmatpush2.msra.mxu0 0.0
    %773 = vmatprep.subr.mxu0 0.0
    %774 = vmatpush2.msra.mxu0 0.0
    %775 = vmatprep.mubr.f32.mxu0 0.0
    %776 = vmatmul.mubr.f32.gmra.mxu0 %v706
    %v777 = vpop.f32.mrf.mxu0
    %v778 = vadd.f32 0.0, %v777
    %v779 = vpop.f32.mrf.mxu0
    %780 = vmatprep.mubr.f32.mxu0 0.0
    %781 = vmatmul.mubr.f32.gmra.mxu0 %v709
    %v782 = vpop.f32.mrf.mxu0
    %v783 = vadd.f32 0.0, %v782
    %v784 = vpop.f32.mrf.mxu0
    %785 = vdwg.mxu0
    %v786 = vadd.f32 %v691, %v778
    %v787 = vadd.f32 %v696, %v783
    %788 = vrot.lane.b32.xlu0 %v237, 32
    %v789 = vpop.permute.xlu0 %788
    %790 = vrot.lane.b32.xlu0 %v242, 32
    %v791 = vpop.permute.xlu0 %790
    %v795 = vsel %vm440, %v526, 0
    %v798 = vsel %vm440, %v528, 0
    %800 = vmatprep.subr.mxu0 0.0
    %801 = vmatpush1.msra.mxu0 0.0
    %802 = vmatprep.subr.mxu0 0.0
    %803 = vmatpush1.msra.mxu0 0.0
    %804 = vmatprep.subr.mxu0 0.0
    %805 = vmatpush1.msra.mxu0 0.0
    %806 = vmatprep.subr.mxu0 0.0
    %807 = vmatpush1.msra.mxu0 0.0
    %808 = vmatprep.subr.mxu0 0.0
    %809 = vmatpush1.msra.mxu0 0.0
    %810 = vmatprep.subr.mxu0 0.0
    %811 = vmatpush1.msra.mxu0 0.0
    %812 = vmatprep.subr.mxu0 0.0
    %813 = vmatpush1.msra.mxu0 0.0
    %814 = vmatprep.subr.mxu0 0.0
    %815 = vmatpush1.msra.mxu0 0.0
    %816 = vmatprep.subr.mxu0 0.0
    %817 = vmatpush1.msra.mxu0 0.0
    %818 = vmatprep.subr.mxu0 0.0
    %819 = vmatpush1.msra.mxu0 0.0
    %820 = vmatprep.subr.mxu0 0.0
    %821 = vmatpush1.msra.mxu0 0.0
    %822 = vmatprep.subr.mxu0 0.0
    %823 = vmatpush1.msra.mxu0 0.0
    %824 = vmatprep.subr.mxu0 0.0
    %825 = vmatpush1.msra.mxu0 0.0
    %826 = vmatprep.subr.mxu0 0.0
    %827 = vmatpush1.msra.mxu0 0.0
    %828 = vmatprep.subr.mxu0 0.0
    %829 = vmatpush1.msra.mxu0 %v791
    %830 = vmatprep.subr.mxu0 0.0
    %831 = vmatpush1.msra.mxu0 %v789
    %832 = vmatprep.subr.mxu0 0.0
    %833 = vmatpush2.msra.mxu0 0.0
    %834 = vmatprep.subr.mxu0 0.0
    %835 = vmatpush2.msra.mxu0 0.0
    %836 = vmatprep.subr.mxu0 0.0
    %837 = vmatpush2.msra.mxu0 0.0
    %838 = vmatprep.subr.mxu0 0.0
    %839 = vmatpush2.msra.mxu0 0.0
    %840 = vmatprep.subr.mxu0 0.0
    %841 = vmatpush2.msra.mxu0 0.0
    %842 = vmatprep.subr.mxu0 0.0
    %843 = vmatpush2.msra.mxu0 0.0
    %844 = vmatprep.subr.mxu0 0.0
    %845 = vmatpush2.msra.mxu0 0.0
    %846 = vmatprep.subr.mxu0 0.0
    %847 = vmatpush2.msra.mxu0 0.0
    %848 = vmatprep.subr.mxu0 0.0
    %849 = vmatpush2.msra.mxu0 0.0
    %850 = vmatprep.subr.mxu0 0.0
    %851 = vmatpush2.msra.mxu0 0.0
    %852 = vmatprep.subr.mxu0 0.0
    %853 = vmatpush2.msra.mxu0 0.0
    %854 = vmatprep.subr.mxu0 0.0
    %855 = vmatpush2.msra.mxu0 0.0
    %856 = vmatprep.subr.mxu0 0.0
    %857 = vmatpush2.msra.mxu0 0.0
    %858 = vmatprep.subr.mxu0 0.0
    %859 = vmatpush2.msra.mxu0 0.0
    %860 = vmatprep.subr.mxu0 0.0
    %861 = vmatpush2.msra.mxu0 0.0
    %862 = vmatprep.subr.mxu0 0.0
    %863 = vmatpush2.msra.mxu0 0.0
    %864 = vmatprep.mubr.f32.mxu0 0.0
    %865 = vmatmul.mubr.f32.gmra.mxu0 %v795
    %v866 = vpop.f32.mrf.mxu0
    %v867 = vadd.f32 0.0, %v866
    %v868 = vpop.f32.mrf.mxu0
    %869 = vmatprep.mubr.f32.mxu0 0.0
    %870 = vmatmul.mubr.f32.gmra.mxu0 %v798
    %v871 = vpop.f32.mrf.mxu0
    %v872 = vadd.f32 0.0, %v871
    %v873 = vpop.f32.mrf.mxu0
    %874 = vdwg.mxu0
    %v875 = vadd.f32 %v786, %v867
    %v876 = vadd.f32 %v787, %v872
    %v877 = vlaneseq
    %v878 = vshrl.u32 %v877, 7
    %v879 = vsub.s32 0, %v878
    %v880 = vrot.slane %v78, %v879
    %v881 = vadd.f32 %v875, %v880
    %v882 = vadd.f32 %v876, %v880
    %v883 = vadd.f32 %v54, %v881
    %v884 = vadd.f32 %v55, %v882
    %v885 = vsel %vm88, %v883, 0.0
    %886 = vadd.xlane.f32.xlu0 %v885
    %v887 = vpop.xlane.xlu0 %886
    %v888 = vsel %vm88, %v884, 0.0
    %889 = vadd.xlane.f32.xlu0 %v888
    %v890 = vpop.xlane.xlu0 %889
    %v891 = vrcp.pop 32.0
    %v892 = vmul.f32 %v887, %v891
    %v893 = vmul.f32 %v890, %v891
    %v894 = vsub.f32 %v883, %v892
    %v895 = vsub.f32 %v884, %v893
    %v896 = vmul.f32 %v894, %v894
    %v897 = vmul.f32 %v895, %v895
    %v898 = vsel %vm88, %v896, 0.0
    %899 = vadd.xlane.f32.xlu0 %v898
    %v900 = vpop.xlane.xlu0 %899
    %v901 = vsel %vm88, %v897, 0.0
    %902 = vadd.xlane.f32.xlu0 %v901
    %v903 = vpop.xlane.xlu0 %902
    %v904 = vmul.f32 %v900, %v891
    %v905 = vmul.f32 %v903, %v891
    %v906 = vadd.f32 %v904, 1e-05
    %v907 = vadd.f32 %v905, 1e-05
    %v908 = vrsqrt.pop %v906
    %v909 = vrsqrt.pop %v907
    %v910 = vmul.f32 %v894, %v908
    %v911 = vmul.f32 %v895, %v909
    %v912 = vlaneseq
    %v913 = vshrl.u32 %v912, 7
    %v914 = vsub.s32 0, %v913
    %v915 = vrot.slane %v80, %v914
    %v916 = vmul.f32 %v910, %v915
    %v917 = vmul.f32 %v911, %v915
    %v918 = vlaneseq
    %v919 = vshrl.u32 %v918, 7
    %v920 = vsub.s32 0, %v919
    %v921 = vrot.slane %v81, %v920
    %v922 = vadd.f32 %v916, %v921
    %v923 = vadd.f32 %v917, %v921
    %v924 = vlaneseq
    %v925 = vshrl.u32 %v924, 7
    %v926 = vsub.s32 0, %v925
    %v927 = vrot.slane %v77, %v926
    %v929 = vsel %vm88, %v922, 0
    %v932 = vsel %vm88, %v923, 0
    %934 = vmatprep.subr.mxu0 0.0
    %935 = vmatpush1.msra.mxu0 0.0
    %936 = vmatprep.subr.mxu0 0.0
    %937 = vmatpush1.msra.mxu0 0.0
    %938 = vmatprep.subr.mxu0 0.0
    %939 = vmatpush1.msra.mxu0 0.0
    %940 = vmatprep.subr.mxu0 0.0
    %941 = vmatpush1.msra.mxu0 0.0
    %942 = vmatprep.subr.mxu0 0.0
    %943 = vmatpush1.msra.mxu0 0.0
    %944 = vmatprep.subr.mxu0 0.0
    %945 = vmatpush1.msra.mxu0 0.0
    %946 = vmatprep.subr.mxu0 0.0
    %947 = vmatpush1.msra.mxu0 0.0
    %948 = vmatprep.subr.mxu0 0.0
    %949 = vmatpush1.msra.mxu0 0.0
    %950 = vmatprep.subr.mxu0 0.0
    %951 = vmatpush1.msra.mxu0 0.0
    %952 = vmatprep.subr.mxu0 0.0
    %953 = vmatpush1.msra.mxu0 0.0
    %954 = vmatprep.subr.mxu0 0.0
    %955 = vmatpush1.msra.mxu0 0.0
    %956 = vmatprep.subr.mxu0 0.0
    %957 = vmatpush1.msra.mxu0 0.0
    %958 = vmatprep.subr.mxu0 0.0
    %959 = vmatpush1.msra.mxu0 %v67
    %960 = vmatprep.subr.mxu0 0.0
    %961 = vmatpush1.msra.mxu0 %v66
    %962 = vmatprep.subr.mxu0 0.0
    %963 = vmatpush1.msra.mxu0 %v65
    %964 = vmatprep.subr.mxu0 0.0
    %965 = vmatpush1.msra.mxu0 %v64
    %966 = vmatprep.subr.mxu0 0.0
    %967 = vmatpush2.msra.mxu0 0.0
    %968 = vmatprep.subr.mxu0 0.0
    %969 = vmatpush2.msra.mxu0 0.0
    %970 = vmatprep.subr.mxu0 0.0
    %971 = vmatpush2.msra.mxu0 0.0
    %972 = vmatprep.subr.mxu0 0.0
    %973 = vmatpush2.msra.mxu0 0.0
    %974 = vmatprep.subr.mxu0 0.0
    %975 = vmatpush2.msra.mxu0 0.0
    %976 = vmatprep.subr.mxu0 0.0
    %977 = vmatpush2.msra.mxu0 0.0
    %978 = vmatprep.subr.mxu0 0.0
    %979 = vmatpush2.msra.mxu0 0.0
    %980 = vmatprep.subr.mxu0 0.0
    %981 = vmatpush2.msra.mxu0 0.0
    %982 = vmatprep.subr.mxu0 0.0
    %983 = vmatpush2.msra.mxu0 0.0
    %984 = vmatprep.subr.mxu0 0.0
    %985 = vmatpush2.msra.mxu0 0.0
    %986 = vmatprep.subr.mxu0 0.0
    %987 = vmatpush2.msra.mxu0 0.0
    %988 = vmatprep.subr.mxu0 0.0
    %989 = vmatpush2.msra.mxu0 0.0
    %990 = vmatprep.subr.mxu0 0.0
    %991 = vmatpush2.msra.mxu0 0.0
    %992 = vmatprep.subr.mxu0 0.0
    %993 = vmatpush2.msra.mxu0 0.0
    %994 = vmatprep.subr.mxu0 0.0
    %995 = vmatpush2.msra.mxu0 0.0
    %996 = vmatprep.subr.mxu0 0.0
    %997 = vmatpush2.msra.mxu0 0.0
    %998 = vmatprep.mubr.f32.mxu0 0.0
    %999 = vmatmul.mubr.f32.gmra.mxu0 %v929
    %v1000 = vpop.f32.mrf.mxu0
    %v1001 = vadd.f32 %v927, %v1000
    %v1002 = vpop.f32.mrf.mxu0
    %1003 = vmatprep.mubr.f32.mxu0 0.0
    %1004 = vmatmul.mubr.f32.gmra.mxu0 %v932
    %v1005 = vpop.f32.mrf.mxu0
    %v1006 = vadd.f32 %v927, %v1005
    %v1007 = vpop.f32.mrf.mxu0
    %1008 = vdwg.mxu0
    %v1009 = vmul.f32 %v1001, 0.5
    %v1010 = vmul.f32 %v1006, 0.5
    %v1011 = vmul.f32 %v1001, 0.70710677
    %v1012 = vmul.f32 %v1006, 0.70710677
    %vm1013 = vcmp.ge.f32.partialorder %v1011, 0.0
    %vm1014 = vcmp.ge.f32.partialorder %v1012, 0.0
    %v1015 = vsel %vm1013, 1.0, -1.0
    %v1016 = vsel %vm1014, 1.0, -1.0
    %v1017 = vand.u32 2147483647, %v1011
    %v1018 = vand.u32 2147483647, %v1012
    %v1019 = vmul.f32 %v1017, 0.3275911
    %v1020 = vmul.f32 %v1018, 0.3275911
    %v1021 = vadd.f32 %v1019, 1.0
    %v1022 = vadd.f32 %v1020, 1.0
    %v1023 = vrcp.pop %v1021
    %v1024 = vmul.f32 1.0, %v1023
    %v1025 = vrcp.pop %v1022
    %v1026 = vmul.f32 1.0, %v1025
    %v1027 = vmul.f32 %v1024, 1.0614054
    %v1028 = vmul.f32 %v1026, 1.0614054
    %v1029 = vadd.f32 %v1027, -1.4531521
    %v1030 = vadd.f32 %v1028, -1.4531521
    %v1031 = vmul.f32 %v1029, %v1024
    %v1032 = vmul.f32 %v1030, %v1026
    %v1033 = vadd.f32 %v1031, 1.4214138
    %v1034 = vadd.f32 %v1032, 1.4214138
    %v1035 = vmul.f32 %v1033, %v1024
    %v1036 = vmul.f32 %v1034, %v1026
    %v1037 = vadd.f32 %v1035, -0.28449672
    %v1038 = vadd.f32 %v1036, -0.28449672
    %v1039 = vmul.f32 %v1037, %v1024
    %v1040 = vmul.f32 %v1038, %v1026
    %v1041 = vadd.f32 %v1039, 0.2548296
    %v1042 = vadd.f32 %v1040, 0.2548296
    %v1043 = vmul.f32 %v1041, %v1024
    %v1044 = vmul.f32 %v1042, %v1026
    %v1045 = vsub.f32 0.0, %v1017
    %v1046 = vsub.f32 0.0, %v1018
    %v1047 = vmul.f32 %v1045, %v1017
    %v1048 = vmul.f32 %v1046, %v1018
    %v1049 = vmul.f32 %v1047, 1.442695
    %v1050 = vpow.pop %v1049
    %v1051 = vmul.f32 %v1048, 1.442695
    %v1052 = vpow.pop %v1051
    %v1053 = vmul.f32 %v1043, %v1050
    %v1054 = vmul.f32 %v1044, %v1052
    %v1055 = vsub.f32 1.0, %v1053
    %v1056 = vsub.f32 1.0, %v1054
    %v1057 = vmul.f32 %v1015, %v1055
    %v1058 = vmul.f32 %v1016, %v1056
    %v1059 = vadd.f32 %v1057, 1.0
    %v1060 = vadd.f32 %v1058, 1.0
    %v1061 = vmul.f32 %v1009, %v1059
    %v1062 = vmul.f32 %v1010, %v1060
    %v1063 = vlaneseq
    %v1064 = vshrl.u32 %v1063, 7
    %v1065 = vsub.s32 0, %v1064
    %v1066 = vrot.slane %v79, %v1065
    %vm1067 = vcmask 523264
    %v1069 = vsel %vm1067, %v1061, 0
    %v1072 = vsel %vm1067, %v1062, 0
    %1074 = vmatprep.subr.mxu0 0.0
    %1075 = vmatpush1.msra.mxu0 0.0
    %1076 = vmatprep.subr.mxu0 0.0
    %1077 = vmatpush1.msra.mxu0 0.0
    %1078 = vmatprep.subr.mxu0 0.0
    %1079 = vmatpush1.msra.mxu0 0.0
    %1080 = vmatprep.subr.mxu0 0.0
    %1081 = vmatpush1.msra.mxu0 0.0
    %1082 = vmatprep.subr.mxu0 0.0
    %1083 = vmatpush1.msra.mxu0 0.0
    %1084 = vmatprep.subr.mxu0 0.0
    %1085 = vmatpush1.msra.mxu0 0.0
    %1086 = vmatprep.subr.mxu0 0.0
    %1087 = vmatpush1.msra.mxu0 0.0
    %1088 = vmatprep.subr.mxu0 0.0
    %1089 = vmatpush1.msra.mxu0 0.0
    %1090 = vmatprep.subr.mxu0 0.0
    %1091 = vmatpush1.msra.mxu0 %v75
    %1092 = vmatprep.subr.mxu0 0.0
    %1093 = vmatpush1.msra.mxu0 %v74
    %1094 = vmatprep.subr.mxu0 0.0
    %1095 = vmatpush1.msra.mxu0 %v73
    %1096 = vmatprep.subr.mxu0 0.0
    %1097 = vmatpush1.msra.mxu0 %v72
    %1098 = vmatprep.subr.mxu0 0.0
    %1099 = vmatpush1.msra.mxu0 %v71
    %1100 = vmatprep.subr.mxu0 0.0
    %1101 = vmatpush1.msra.mxu0 %v70
    %1102 = vmatprep.subr.mxu0 0.0
    %1103 = vmatpush1.msra.mxu0 %v69
    %1104 = vmatprep.subr.mxu0 0.0
    %1105 = vmatpush1.msra.mxu0 %v68
    %1106 = vmatprep.subr.mxu0 0.0
    %1107 = vmatpush2.msra.mxu0 0.0
    %1108 = vmatprep.subr.mxu0 0.0
    %1109 = vmatpush2.msra.mxu0 0.0
    %1110 = vmatprep.subr.mxu0 0.0
    %1111 = vmatpush2.msra.mxu0 0.0
    %1112 = vmatprep.subr.mxu0 0.0
    %1113 = vmatpush2.msra.mxu0 0.0
    %1114 = vmatprep.subr.mxu0 0.0
    %1115 = vmatpush2.msra.mxu0 0.0
    %1116 = vmatprep.subr.mxu0 0.0
    %1117 = vmatpush2.msra.mxu0 0.0
    %1118 = vmatprep.subr.mxu0 0.0
    %1119 = vmatpush2.msra.mxu0 0.0
    %1120 = vmatprep.subr.mxu0 0.0
    %1121 = vmatpush2.msra.mxu0 0.0
    %1122 = vmatprep.subr.mxu0 0.0
    %1123 = vmatpush2.msra.mxu0 0.0
    %1124 = vmatprep.subr.mxu0 0.0
    %1125 = vmatpush2.msra.mxu0 0.0
    %1126 = vmatprep.subr.mxu0 0.0
    %1127 = vmatpush2.msra.mxu0 0.0
    %1128 = vmatprep.subr.mxu0 0.0
    %1129 = vmatpush2.msra.mxu0 0.0
    %1130 = vmatprep.subr.mxu0 0.0
    %1131 = vmatpush2.msra.mxu0 0.0
    %1132 = vmatprep.subr.mxu0 0.0
    %1133 = vmatpush2.msra.mxu0 0.0
    %1134 = vmatprep.subr.mxu0 0.0
    %1135 = vmatpush2.msra.mxu0 0.0
    %1136 = vmatprep.subr.mxu0 0.0
    %1137 = vmatpush2.msra.mxu0 0.0
    %1138 = vmatprep.mubr.f32.mxu0 0.0
    %1139 = vmatmul.mubr.f32.gmra.mxu0 %v1069
    %v1140 = vpop.f32.mrf.mxu0
    %v1141 = vadd.f32 %v1066, %v1140
    %v1142 = vpop.f32.mrf.mxu0
    %1143 = vmatprep.mubr.f32.mxu0 0.0
    %1144 = vmatmul.mubr.f32.gmra.mxu0 %v1072
    %v1145 = vpop.f32.mrf.mxu0
    %v1146 = vadd.f32 %v1066, %v1145
    %v1147 = vpop.f32.mrf.mxu0
    %1148 = vdwg.mxu0
    %v1149 = vadd.f32 %v922, %v1141
    %v1150 = vadd.f32 %v923, %v1146
    %v1151 = vsel %vm88, %v1149, 0.0
    %1152 = vadd.xlane.f32.xlu0 %v1151
    %v1153 = vpop.xlane.xlu0 %1152
    %v1154 = vsel %vm88, %v1150, 0.0
    %1155 = vadd.xlane.f32.xlu0 %v1154
    %v1156 = vpop.xlane.xlu0 %1155
    %v1157 = vmul.f32 %v1153, %v891
    %v1158 = vmul.f32 %v1156, %v891
    %v1159 = vsub.f32 %v1149, %v1157
    %v1160 = vsub.f32 %v1150, %v1158
    %v1161 = vmul.f32 %v1159, %v1159
    %v1162 = vmul.f32 %v1160, %v1160
    %v1163 = vsel %vm88, %v1161, 0.0
    %1164 = vadd.xlane.f32.xlu0 %v1163
    %v1165 = vpop.xlane.xlu0 %1164
    %v1166 = vsel %vm88, %v1162, 0.0
    %1167 = vadd.xlane.f32.xlu0 %v1166
    %v1168 = vpop.xlane.xlu0 %1167
    %v1169 = vmul.f32 %v1165, %v891
    %v1170 = vmul.f32 %v1168, %v891
    %v1171 = vadd.f32 %v1169, 1e-05
    %v1172 = vadd.f32 %v1170, 1e-05
    %v1173 = vrsqrt.pop %v1171
    %v1174 = vrsqrt.pop %v1172
    %v1175 = vmul.f32 %v1159, %v1173
    %v1176 = vmul.f32 %v1160, %v1174
    %v1177 = vlaneseq
    %v1178 = vshrl.u32 %v1177, 7
    %v1179 = vsub.s32 0, %v1178
    %v1180 = vrot.slane %v82, %v1179
    %v1181 = vmul.f32 %v1175, %v1180
    %v1182 = vmul.f32 %v1176, %v1180
    %v1183 = vlaneseq
    %v1184 = vshrl.u32 %v1183, 7
    %v1185 = vsub.s32 0, %v1184
    %v1186 = vrot.slane %v83, %v1185
    %v1187 = vadd.f32 %v1181, %v1186
    %v1188 = vadd.f32 %v1182, %v1186
    %1189 = vst.msk [vmem:[#allocation8] sm:$0xff] %vm88, %v1187
    %1190 = vst.msk [vmem:[#allocation8 + $0x8] sm:$0xff] %vm88, %v1188
    // Predicated region
    $region26: #{transformer_encoder_layer.1} parent=1 // pred_check
      _
    $region27: #{transformer_encoder_layer.1} parent=1 // pred_check_branch
      %1192 = sbr.rel (0) target = $region29
    $region28: #{transformer_encoder_layer.1} parent=1 // pred_region
      %s1194 = ssub.s32 256, 256
      %1195 = vsyncadd [#allocation4], %s1194
      %s1196 = sshll.u32 [#allocation8], 4
      %s1197 = int_to_ptr.vmem [resolvable:$true] %s1196
      %1202 = dma.vmem_to_hbm [thread:$0]  %s1197, 256, %s3, [#allocation4], 128, 128, 8
    $region29: #{transformer_encoder_layer.1} parent=1 // pred_fallthru
      _
    // Predicated region
    $region30: #{transformer_encoder_layer.1} parent=1 // pred_check
      _
    $region31: #{transformer_encoder_layer.1} parent=1 // pred_check_branch
      %1204 = sbr.rel (0) target = $region33
    $region32: #{transformer_encoder_layer.1} parent=1 // pred_region
      %1205 = dma.done [#allocation4], 256
    $region33: #{transformer_encoder_layer.1} parent=1 // pred_fallthru
      _
    %1206 = vsyncpa [#allocation3], 1
    %1207 = vsyncpa [#allocation6], 1
    %1208 = vsyncpa [#allocation4], 1

</llo_original>
